<compile_context>
chip_gen: v7x
topology: tpu7x:2x2x1
jax: 0.10.0
libtpu: 0.0.40
codegen_flags: <defaults>
</compile_context>

<pallas_src>
import jax
import jax.numpy as jnp
import numpy as np
from jax.experimental import pallas as pl
from jax.experimental.pallas import tpu as pltpu

EPS = 1e-5


def _bn_relu_fused(h):
    """Training-mode BatchNorm1d (gamma=1, beta=0) + ReLU, folded to scale/shift.

    h: (B, N) f32. Per-element work on (B, N): h*h (for E[h^2]), h*scale+shift, max.
    rsqrt goes to the EUP slot (free relative to the VALU).
    """
    mean = jnp.mean(h, axis=0, keepdims=True)                     # (1, N)
    msq = jnp.mean(h * h, axis=0, keepdims=True)                  # (1, N)
    var = jnp.maximum(msq - mean * mean, 0.0)                     # biased var, clamped
    scale = jax.lax.rsqrt(var + EPS)                              # (1, N)
    shift = -mean * scale                                         # (1, N)
    return jnp.maximum(h * scale + shift, 0.0)


def portfolio_actor_kernel(state_ref, w1_ref, w2_ref, w3_ref, b3_ref, out_ref):
    # fc1 (bias dropped: cancelled by training-mode BN mean subtraction) -> bn1 -> relu
    # state/w1 are bf16 -> bf16 MXU matmul with f32 accumulation.
    h1 = jnp.dot(state_ref[...], w1_ref[...],
                 preferred_element_type=jnp.float32)              # (B, fc1) f32
    h1 = _bn_relu_fused(h1)

    # fc2 (bias dropped) -> bn2 -> relu. f32 matmul: MXU has slack, saves the
    # bf16 repack (VPU pack ops + extra bf16 VMEM buffer + vst traffic).
    h2 = jnp.dot(h1, w2_ref[...], preferred_element_type=jnp.float32)  # (B, fc2) f32
    h2 = _bn_relu_fused(h2)

    # fc3 (no activation), f32 matmul + bias. Direct (B, fc3) store.
    out_ref[...] = (
        jnp.dot(h2, w3_ref[...], preferred_element_type=jnp.float32) + b3_ref[...]
    ).astype(out_ref.dtype)


def _vmem_footprint_bytes(B, S, fc1, fc2, fc3):
    """Rough whole-batch-resident VMEM footprint (tile-padded, with margin)."""
    def padded(rows, cols, itemsize, sublane=8):
        r = -(-rows // sublane) * sublane
        c = -(-cols // 128) * 128
        return r * c * itemsize

    total = 0
    total += padded(B, S, 2, sublane=16)      # state bf16
    total += padded(S, fc1, 2, sublane=16)    # w1 bf16
    total += padded(fc1, fc2, 4)              # w2 f32
    total += padded(fc2, fc3, 4)              # w3 f32
    total += padded(1, fc3, 4)                # b3
    total += padded(B, fc1, 4)                # h1
    total += padded(B, fc2, 4)                # h2
    total += padded(B, fc3, 4)                # out
    return total


def portfolio_actor_forward(state, params):
    """state: (B, state_size) float32. params: dict from init_params()."""
    B, S = state.shape
    fc1 = params["w1"].shape[1]
    fc2 = params["w2"].shape[1]
    fc3 = params["w3"].shape[1]

    state_bf16 = state.astype(jnp.bfloat16)   # halve input DMA bytes
    args = (state_bf16, params["w1"], params["w2"], params["w3"], params["b3"])
    vmem = pl.BlockSpec(memory_space=pltpu.MemorySpace.VMEM)

    flops = int(2 * B * (S * fc1 + fc1 * fc2 + fc2 * fc3))
    bytes_accessed = int(
        sum(int(np.prod(a.shape)) * a.dtype.itemsize for a in args) + B * fc3 * 4
    )
    cost = pl.CostEstimate(
        flops=flops,
        transcendentals=int(fc1 + fc2),       # one rsqrt per feature per BN layer
        bytes_accessed=bytes_accessed,
    )

    # Whole-batch-resident design: size scoped VMEM from the real footprint so
    # large batches don't hit the 16/32 MiB scoped default, but stay legal on
    # v7x's 64 MiB physical VMEM.
    footprint = _vmem_footprint_bytes(B, S, fc1, fc2, fc3)
    vmem_limit = int(min(max(2 * footprint + (1 << 20), 16 << 20), 64 << 20))
    compiler_params = pltpu.CompilerParams(vmem_limit_bytes=vmem_limit)

    return pl.pallas_call(
        portfolio_actor_kernel,
        out_shape=jax.ShapeDtypeStruct((B, fc3), jnp.float32),
        in_specs=[vmem] * len(args),
        out_specs=vmem,
        cost_estimate=cost,
        compiler_params=compiler_params,
    )(*args)


def init_params(key, state_size, fc1_units=256, fc2_units=128, fc3_units=64):
    """Deterministic init mirroring PortfolioActor.reset_parameters().

    Linear weights are pre-transposed to (in, out). w1 is bf16 (pairs with the
    bf16 state for the MXU); w2/w3 stay f32 (f32 matmuls, MXU has slack).
    fc1/fc2 biases omitted (zero at init AND cancelled by training-mode BN);
    gamma/beta omitted (1/0 at init, folded into the kernel).
    """
    k1, k2, k3 = jax.random.split(key, 3)

    def uniform_fan_in(k, fan_in, fan_out, dtype):
        lim = 1.0 / np.sqrt(fan_in)
        w = jax.random.uniform(k, (fan_in, fan_out), jnp.float32, -lim, lim)
        return w.astype(dtype)

    return {
        "w1": uniform_fan_in(k1, state_size, fc1_units, jnp.bfloat16),
        "w2": uniform_fan_in(k2, fc1_units, fc2_units, jnp.float32),
        "w3": uniform_fan_in(k3, fc2_units, fc3_units, jnp.float32),
        "b3": jnp.zeros((1, fc3_units), jnp.float32),   # fc3 bias is 0 at init
    }


if __name__ == "__main__":
    key = jax.random.PRNGKey(0)
    k_state, k_params = jax.random.split(key)

    batch = 256            # multiple of 16/128: keeps bf16 sublane packing + MXU fed
    state_size = 32        # e.g. 4 assets x 8 features
    fc1_units, fc2_units, fc3_units = 256, 128, 64

    state = jax.random.normal(k_state, (batch, state_size), jnp.float32)
    params = init_params(k_params, state_size, fc1_units, fc2_units, fc3_units)

    out = portfolio_actor_forward(state, params)
    out = jax.block_until_ready(out)

    # Pure-JAX reference mirroring the kernel math exactly (bf16 fc1 operands,
    # f32 accumulation and f32 fc2/fc3, fused gamma=1/beta=0 BN scale/shift).
    def ref(x, p):
        def bn_relu(h):
            m = h.mean(0, keepdims=True)
            var = jnp.maximum((h * h).mean(0, keepdims=True) - m * m, 0.0)
            sc = jax.lax.rsqrt(var + EPS)
            return jnp.maximum(h * sc - m * sc, 0.0)

        h = jnp.dot(x.astype(jnp.bfloat16), p["w1"], preferred_element_type=jnp.float32)
        h = bn_relu(h)
        h = jnp.dot(h, p["w2"], preferred_element_type=jnp.float32)
        h = bn_relu(h)
        return jnp.dot(h, p["w3"], preferred_element_type=jnp.float32) + p["b3"]

    ref_out = ref(state, params)
    assert out.shape == (batch, fc3_units)
    np.testing.assert_allclose(np.asarray(out), np.asarray(ref_out), rtol=1e-2, atol=1e-2)

    print("KERNEL_OK")
</pallas_src>

<mosaic_0001>
module attributes {stable_mosaic.version = 11 : i64} {
  func.func @portfolio_actor_kernel(%arg0: memref<256x32xbf16, #tpu.memory_space<vmem>>, %arg1: memref<32x256xbf16, #tpu.memory_space<vmem>>, %arg2: memref<256x128xf32, #tpu.memory_space<vmem>>, %arg3: memref<128x64xf32, #tpu.memory_space<vmem>>, %arg4: memref<1x64xf32, #tpu.memory_space<vmem>>, %arg5: memref<256x64xf32, #tpu.memory_space<vmem>>) attributes {dimension_semantics = [], scalar_prefetch = 0 : i64, scratch_operands = 0 : i64, tpu.core_type = #tpu.core_type<tc>} {
    %c0 = arith.constant 0 : index
    %c0_0 = arith.constant 0 : index
    %0 = vector.load %arg0[%c0, %c0_0] : memref<256x32xbf16, #tpu.memory_space<vmem>>, vector<256x32xbf16>
    %c0_1 = arith.constant 0 : index
    %c0_2 = arith.constant 0 : index
    %1 = vector.load %arg1[%c0_1, %c0_2] : memref<32x256xbf16, #tpu.memory_space<vmem>>, vector<32x256xbf16>
    %cst = arith.constant dense<0.000000e+00> : vector<256x256xf32>
    %2 = tpu.matmul %0, %1, %cst {dimension_numbers = #tpu.dot_dimension_numbers<[1], [0], [0], [1], [0, 0, 1, 1], [], []>} : vector<256x32xbf16>, vector<32x256xbf16>, vector<256x256xf32> -> vector<256x256xf32>
    %cst_3 = arith.constant dense<0.000000e+00> : vector<256xf32>
    %3 = vector.multi_reduction <add>, %2, %cst_3 [0] : vector<256x256xf32> to vector<256xf32>
    %4 = vector.shape_cast %3 : vector<256xf32> to vector<1x256xf32>
    %cst_4 = arith.constant 2.560000e+02 : f32
    %5 = vector.broadcast %cst_4 : f32 to vector<1x256xf32>
    %6 = arith.divf %4, %5 : vector<1x256xf32>
    %7 = arith.mulf %2, %2 : vector<256x256xf32>
    %cst_5 = arith.constant dense<0.000000e+00> : vector<256xf32>
    %8 = vector.multi_reduction <add>, %7, %cst_5 [0] : vector<256x256xf32> to vector<256xf32>
    %9 = vector.shape_cast %8 : vector<256xf32> to vector<1x256xf32>
    %cst_6 = arith.constant 2.560000e+02 : f32
    %10 = vector.broadcast %cst_6 : f32 to vector<1x256xf32>
    %11 = arith.divf %9, %10 : vector<1x256xf32>
    %12 = arith.mulf %6, %6 : vector<1x256xf32>
    %13 = arith.subf %11, %12 : vector<1x256xf32>
    %cst_7 = arith.constant 0.000000e+00 : f32
    %14 = vector.broadcast %cst_7 : f32 to vector<1x256xf32>
    %15 = arith.maximumf %13, %14 : vector<1x256xf32>
    %cst_8 = arith.constant 9.99999974E-6 : f32
    %16 = vector.broadcast %cst_8 : f32 to vector<1x256xf32>
    %17 = arith.addf %15, %16 : vector<1x256xf32>
    %18 = math.rsqrt %17 : vector<1x256xf32>
    %cst_9 = arith.constant 0.000000e+00 : f32
    %19 = vector.broadcast %cst_9 : f32 to vector<1x256xf32>
    %20 = arith.subf %19, %6 : vector<1x256xf32>
    %21 = arith.mulf %20, %18 : vector<1x256xf32>
    %22 = vector.broadcast %18 : vector<1x256xf32> to vector<256x256xf32>
    %23 = arith.mulf %2, %22 : vector<256x256xf32>
    %24 = vector.broadcast %21 : vector<1x256xf32> to vector<256x256xf32>
    %25 = arith.addf %23, %24 : vector<256x256xf32>
    %cst_10 = arith.constant 0.000000e+00 : f32
    %26 = vector.broadcast %cst_10 : f32 to vector<256x256xf32>
    %27 = arith.maximumf %25, %26 : vector<256x256xf32>
    %c0_11 = arith.constant 0 : index
    %c0_12 = arith.constant 0 : index
    %28 = vector.load %arg2[%c0_11, %c0_12] : memref<256x128xf32, #tpu.memory_space<vmem>>, vector<256x128xf32>
    %cst_13 = arith.constant dense<0.000000e+00> : vector<256x128xf32>
    %29 = tpu.matmul %27, %28, %cst_13 {dimension_numbers = #tpu.dot_dimension_numbers<[1], [0], [0], [1], [0, 0, 1, 1], [], []>} : vector<256x256xf32>, vector<256x128xf32>, vector<256x128xf32> -> vector<256x128xf32>
    %cst_14 = arith.constant dense<0.000000e+00> : vector<128xf32>
    %30 = vector.multi_reduction <add>, %29, %cst_14 [0] : vector<256x128xf32> to vector<128xf32>
    %31 = vector.shape_cast %30 : vector<128xf32> to vector<1x128xf32>
    %cst_15 = arith.constant 2.560000e+02 : f32
    %32 = vector.broadcast %cst_15 : f32 to vector<1x128xf32>
    %33 = arith.divf %31, %32 : vector<1x128xf32>
    %34 = arith.mulf %29, %29 : vector<256x128xf32>
    %cst_16 = arith.constant dense<0.000000e+00> : vector<128xf32>
    %35 = vector.multi_reduction <add>, %34, %cst_16 [0] : vector<256x128xf32> to vector<128xf32>
    %36 = vector.shape_cast %35 : vector<128xf32> to vector<1x128xf32>
    %cst_17 = arith.constant 2.560000e+02 : f32
    %37 = vector.broadcast %cst_17 : f32 to vector<1x128xf32>
    %38 = arith.divf %36, %37 : vector<1x128xf32>
    %39 = arith.mulf %33, %33 : vector<1x128xf32>
    %40 = arith.subf %38, %39 : vector<1x128xf32>
    %cst_18 = arith.constant 0.000000e+00 : f32
    %41 = vector.broadcast %cst_18 : f32 to vector<1x128xf32>
    %42 = arith.maximumf %40, %41 : vector<1x128xf32>
    %cst_19 = arith.constant 9.99999974E-6 : f32
    %43 = vector.broadcast %cst_19 : f32 to vector<1x128xf32>
    %44 = arith.addf %42, %43 : vector<1x128xf32>
    %45 = math.rsqrt %44 : vector<1x128xf32>
    %cst_20 = arith.constant 0.000000e+00 : f32
    %46 = vector.broadcast %cst_20 : f32 to vector<1x128xf32>
    %47 = arith.subf %46, %33 : vector<1x128xf32>
    %48 = arith.mulf %47, %45 : vector<1x128xf32>
    %49 = vector.broadcast %45 : vector<1x128xf32> to vector<256x128xf32>
    %50 = arith.mulf %29, %49 : vector<256x128xf32>
    %51 = vector.broadcast %48 : vector<1x128xf32> to vector<256x128xf32>
    %52 = arith.addf %50, %51 : vector<256x128xf32>
    %cst_21 = arith.constant 0.000000e+00 : f32
    %53 = vector.broadcast %cst_21 : f32 to vector<256x128xf32>
    %54 = arith.maximumf %52, %53 : vector<256x128xf32>
    %c0_22 = arith.constant 0 : index
    %c0_23 = arith.constant 0 : index
    %55 = vector.load %arg3[%c0_22, %c0_23] : memref<128x64xf32, #tpu.memory_space<vmem>>, vector<128x64xf32>
    %cst_24 = arith.constant dense<0.000000e+00> : vector<256x64xf32>
    %56 = tpu.matmul %54, %55, %cst_24 {dimension_numbers = #tpu.dot_dimension_numbers<[1], [0], [0], [1], [0, 0, 1, 1], [], []>} : vector<256x128xf32>, vector<128x64xf32>, vector<256x64xf32> -> vector<256x64xf32>
    %c0_25 = arith.constant 0 : index
    %c0_26 = arith.constant 0 : index
    %57 = vector.load %arg4[%c0_25, %c0_26] : memref<1x64xf32, #tpu.memory_space<vmem>>, vector<1x64xf32>
    %58 = vector.broadcast %57 : vector<1x64xf32> to vector<256x64xf32>
    %59 = arith.addf %56, %58 : vector<256x64xf32>
    %c0_27 = arith.constant 0 : index
    %c0_28 = arith.constant 0 : index
    %60 = vector.load %arg5[%c0_27, %c0_28] : memref<256x64xf32, #tpu.memory_space<vmem>>, vector<256x64xf32>
    tpu.vector_store %arg5[%c0_27, %c0_28], %59 {strides = array<i32>} : memref<256x64xf32, #tpu.memory_space<vmem>>, vector<256x64xf32>,
    return
  }
}

</mosaic_0001>

<llo_original>
// kernel: tpu_custom_call.1
$region0: #{tpu_custom_call.1}
  #allocation0 [shape = 'u32[]', space=smem, size = 0x4, offset = 0x4, fixed_abs, tag = 'smem constant byte address 0x4 - core index']
  #allocation1 [shape = 'u32[144,128]{1,0:T(1,128)}', space=vmem, size = 0x12000, scoped, tag = 'internal scratch']
  %s0 = inlined_call_operand.vmem [shape: bf16[256,32], index: 0, kind: input, shape index: {}]
  %s1 = inlined_call_operand.vmem [shape: bf16[32,256], index: 1, kind: input, shape index: {}]
  %s2 = inlined_call_operand.vmem [shape: f32[256,128], index: 2, kind: input, shape index: {}]
  %s3 = inlined_call_operand.vmem [shape: f32[128,64], index: 3, kind: input, shape index: {}]
  %s4 = inlined_call_operand.vmem [shape: f32[1,64], index: 4, kind: input, shape index: {}]
  %s5 = inlined_call_operand.vmem [shape: f32[256,64], index: 5, kind: output, shape index: {}]
  %s6 = sld [smem:[#allocation0]]
  $region30: #{tpu_custom_call.1} parent=0
    _
  %s8 = ssub.s32 1, %s6
  %s9 = scalar_select 0, %s8, %s6
  // Predicated region
  $region2: #{tpu_custom_call.1} parent=0 // pred_check
    _
  $region3: #{tpu_custom_call.1} parent=0 // pred_check_branch
    %11 = sbr.rel (0) target = $region5
  $region4: #{tpu_custom_call.1} parent=0 // pred_region
    _
  $region5: #{tpu_custom_call.1} parent=0 // pred_fallthru
    _
  // Predicated region
  $region6: #{tpu_custom_call.1} parent=0 // pred_check
    _
  $region7: #{tpu_custom_call.1} parent=0 // pred_check_branch
    %13 = sbr.rel (0) target = $region9
  $region8: #{tpu_custom_call.1} parent=0 // pred_region
    _
  $region9: #{tpu_custom_call.1} parent=0 // pred_fallthru
    _
  // Predicated region
  $region10: #{tpu_custom_call.1} parent=0 // pred_check
    _
  $region11: #{tpu_custom_call.1} parent=0 // pred_check_branch
    %15 = sbr.rel (0) target = $region13
  $region12: #{tpu_custom_call.1} parent=0 // pred_region
    _
  $region13: #{tpu_custom_call.1} parent=0 // pred_fallthru
    _
  // Predicated region
  $region14: #{tpu_custom_call.1} parent=0 // pred_check
    _
  $region15: #{tpu_custom_call.1} parent=0 // pred_check_branch
    %17 = sbr.rel (0) target = $region17
  $region16: #{tpu_custom_call.1} parent=0 // pred_region
    _
  $region17: #{tpu_custom_call.1} parent=0 // pred_fallthru
    _
  // Predicated region
  $region18: #{tpu_custom_call.1} parent=0 // pred_check
    _
  $region19: #{tpu_custom_call.1} parent=0 // pred_check_branch
    %19 = sbr.rel (0) target = $region21
  $region20: #{tpu_custom_call.1} parent=0 // pred_region
    _
  $region21: #{tpu_custom_call.1} parent=0 // pred_fallthru
    _
  %v21 = vld [vmem:[%s0] sm:$0xf]
  %v22 = vld [vmem:[%s0 + $0x4] sm:$0xf]
  %v23 = vld [vmem:[%s0 + $0x8] sm:$0xf]
  %v24 = vld [vmem:[%s0 + $0xc] sm:$0xf]
  %v25 = vld [vmem:[%s0 + $0x10] sm:$0xf]
  %v26 = vld [vmem:[%s0 + $0x14] sm:$0xf]
  %v27 = vld [vmem:[%s0 + $0x18] sm:$0xf]
  %v28 = vld [vmem:[%s0 + $0x1c] sm:$0xf]
  %v29 = vld [vmem:[%s0 + $0x20] sm:$0xf]
  %v30 = vld [vmem:[%s0 + $0x24] sm:$0xf]
  %v31 = vld [vmem:[%s0 + $0x28] sm:$0xf]
  %v32 = vld [vmem:[%s0 + $0x2c] sm:$0xf]
  %v33 = vld [vmem:[%s0 + $0x30] sm:$0xf]
  %v34 = vld [vmem:[%s0 + $0x34] sm:$0xf]
  %v35 = vld [vmem:[%s0 + $0x38] sm:$0xf]
  %v36 = vld [vmem:[%s0 + $0x3c] sm:$0xf]
  %v37 = vld [vmem:[%s0 + $0x40] sm:$0xf]
  %v38 = vld [vmem:[%s0 + $0x44] sm:$0xf]
  %v39 = vld [vmem:[%s0 + $0x48] sm:$0xf]
  %v40 = vld [vmem:[%s0 + $0x4c] sm:$0xf]
  %v41 = vld [vmem:[%s0 + $0x50] sm:$0xf]
  %v42 = vld [vmem:[%s0 + $0x54] sm:$0xf]
  %v43 = vld [vmem:[%s0 + $0x58] sm:$0xf]
  %v44 = vld [vmem:[%s0 + $0x5c] sm:$0xf]
  %v45 = vld [vmem:[%s0 + $0x60] sm:$0xf]
  %v46 = vld [vmem:[%s0 + $0x64] sm:$0xf]
  %v47 = vld [vmem:[%s0 + $0x68] sm:$0xf]
  %v48 = vld [vmem:[%s0 + $0x6c] sm:$0xf]
  %v49 = vld [vmem:[%s0 + $0x70] sm:$0xf]
  %v50 = vld [vmem:[%s0 + $0x74] sm:$0xf]
  %v51 = vld [vmem:[%s0 + $0x78] sm:$0xf]
  %v52 = vld [vmem:[%s0 + $0x7c] sm:$0xf]
  %v53 = vld [vmem:[%s1] sm:$0xff]
  %v54 = vld [vmem:[%s1 + $0x8] sm:$0xff]
  %v55 = vld [vmem:[%s1 + $0x10] sm:$0xff]
  %v56 = vld [vmem:[%s1 + $0x18] sm:$0xff]
  %v89 = vunpack.c.l.b16 %v21
  %v90 = vunpack.c.l.b16 %v22
  %v91 = vunpack.c.l.b16 %v23
  %v92 = vunpack.c.l.b16 %v24
  %v93 = vunpack.c.l.b16 %v25
  %v94 = vunpack.c.l.b16 %v26
  %v95 = vunpack.c.l.b16 %v27
  %v96 = vunpack.c.l.b16 %v28
  %v97 = vunpack.c.l.b16 %v29
  %v98 = vunpack.c.l.b16 %v30
  %v99 = vunpack.c.l.b16 %v31
  %v100 = vunpack.c.l.b16 %v32
  %v101 = vunpack.c.l.b16 %v33
  %v102 = vunpack.c.l.b16 %v34
  %v103 = vunpack.c.l.b16 %v35
  %v104 = vunpack.c.l.b16 %v36
  %v105 = vunpack.c.l.b16 %v37
  %v106 = vunpack.c.l.b16 %v38
  %v107 = vunpack.c.l.b16 %v39
  %v108 = vunpack.c.l.b16 %v40
  %v109 = vunpack.c.l.b16 %v41
  %v110 = vunpack.c.l.b16 %v42
  %v111 = vunpack.c.l.b16 %v43
  %v112 = vunpack.c.l.b16 %v44
  %v113 = vunpack.c.l.b16 %v45
  %v114 = vunpack.c.l.b16 %v46
  %v115 = vunpack.c.l.b16 %v47
  %v116 = vunpack.c.l.b16 %v48
  %v117 = vunpack.c.l.b16 %v49
  %v118 = vunpack.c.l.b16 %v50
  %v119 = vunpack.c.l.b16 %v51
  %v120 = vunpack.c.l.b16 %v52
  %v121 = vpack.c.b16 %v90, %v89
  %v122 = vpack.c.b16 %v92, %v91
  %v123 = vpack.c.b16 %v94, %v93
  %v124 = vpack.c.b16 %v96, %v95
  %v125 = vpack.c.b16 %v98, %v97
  %v126 = vpack.c.b16 %v100, %v99
  %v127 = vpack.c.b16 %v102, %v101
  %v128 = vpack.c.b16 %v104, %v103
  %v129 = vpack.c.b16 %v106, %v105
  %v130 = vpack.c.b16 %v108, %v107
  %v131 = vpack.c.b16 %v110, %v109
  %v132 = vpack.c.b16 %v112, %v111
  %v133 = vpack.c.b16 %v114, %v113
  %v134 = vpack.c.b16 %v116, %v115
  %v135 = vpack.c.b16 %v118, %v117
  %v136 = vpack.c.b16 %v120, %v119
  %v141 = vunpack.c.l.b16 %v53
  %v142 = vunpack.c.h.b16 %v53
  %v143 = vunpack.c.l.b16 %v54
  %v144 = vunpack.c.h.b16 %v54
  %v145 = vunpack.c.l.b16 %v55
  %v146 = vunpack.c.h.b16 %v55
  %v147 = vunpack.c.l.b16 %v56
  %v148 = vunpack.c.h.b16 %v56
  %v149 = vpack.c.b16 %v143, %v141
  %v150 = vpack.c.b16 %v144, %v142
  %v151 = vpack.c.b16 %v147, %v145
  %v152 = vpack.c.b16 %v148, %v146
  %vm157 = vcmask 261120
  %v159 = vsel %vm157, %v121, 0
  %v162 = vsel %vm157, %v122, 0
  %v165 = vsel %vm157, %v123, 0
  %v168 = vsel %vm157, %v124, 0
  %v171 = vsel %vm157, %v125, 0
  %v174 = vsel %vm157, %v126, 0
  %v177 = vsel %vm157, %v127, 0
  %v180 = vsel %vm157, %v128, 0
  %v183 = vsel %vm157, %v129, 0
  %v186 = vsel %vm157, %v130, 0
  %v189 = vsel %vm157, %v131, 0
  %v192 = vsel %vm157, %v132, 0
  %v195 = vsel %vm157, %v133, 0
  %v198 = vsel %vm157, %v134, 0
  %v201 = vsel %vm157, %v135, 0
  %v204 = vsel %vm157, %v136, 0
  %206 = vmatprep.subr.bf16.mxu0 %v150
  %207 = vmatpush1.bf16.msra.mxu0 %v149
  %208 = vmatprep.subr.bf16.mxu0 %v152
  %209 = vmatpush1.bf16.msra.mxu0 %v151
  %210 = vmatprep.subr.bf16.mxu0 0
  %211 = vmatpush1.bf16.msra.mxu0 0
  %212 = vmatprep.subr.bf16.mxu0 0
  %213 = vmatpush1.bf16.msra.mxu0 0
  %214 = vmatprep.subr.bf16.mxu0 0
  %215 = vmatpush1.bf16.msra.mxu0 0
  %216 = vmatprep.subr.bf16.mxu0 0
  %217 = vmatpush1.bf16.msra.mxu0 0
  %218 = vmatprep.subr.bf16.mxu0 0
  %219 = vmatpush1.bf16.msra.mxu0 0
  %220 = vmatprep.subr.bf16.mxu0 0
  %221 = vmatpush1.bf16.msra.mxu0 0
  %222 = vmatprep.subr.bf16.mxu0 0
  %223 = vmatpush1.bf16.msra.mxu0 0
  %224 = vmatprep.subr.bf16.mxu0 0
  %225 = vmatpush1.bf16.msra.mxu0 0
  %226 = vmatprep.subr.bf16.mxu0 0
  %227 = vmatpush1.bf16.msra.mxu0 0
  %228 = vmatprep.subr.bf16.mxu0 0
  %229 = vmatpush1.bf16.msra.mxu0 0
  %230 = vmatprep.subr.bf16.mxu0 0
  %231 = vmatpush1.bf16.msra.mxu0 0
  %232 = vmatprep.subr.bf16.mxu0 0
  %233 = vmatpush1.bf16.msra.mxu0 0
  %234 = vmatprep.subr.bf16.mxu0 0
  %235 = vmatpush1.bf16.msra.mxu0 0
  %236 = vmatprep.subr.bf16.mxu0 0
  %237 = vmatpush1.bf16.msra.mxu0 0
  %238 = vmatprep.mubr.bf16.mxu0 0
  %239 = vmatmul.mubr.bf16.gmra.mrb[0].mxu0 %v159
  %v240 = vpop.f32.mrb[0].mxu0
  %v241 = vadd.f32 0.0, %v240
  %v242 = vpop.f32.mrb[0].mxu0
  %v243 = vadd.f32 0.0, %v242
  %v244 = vpop.f32.mrb[0].mxu0
  %v245 = vadd.f32 0.0, %v244
  %v246 = vpop.f32.mrb[0].mxu0
  %v247 = vadd.f32 0.0, %v246
  %248 = vmatprep.mubr.bf16.mxu0 0
  %249 = vmatmul.mubr.bf16.gmra.mrb[0].mxu0 %v162
  %v250 = vpop.f32.mrb[0].mxu0
  %v251 = vadd.f32 0.0, %v250
  %v252 = vpop.f32.mrb[0].mxu0
  %v253 = vadd.f32 0.0, %v252
  %v254 = vpop.f32.mrb[0].mxu0
  %v255 = vadd.f32 0.0, %v254
  %v256 = vpop.f32.mrb[0].mxu0
  %v257 = vadd.f32 0.0, %v256
  %258 = vmatprep.mubr.bf16.mxu0 0
  %259 = vmatmul.mubr.bf16.gmra.mrb[0].mxu0 %v165
  %v260 = vpop.f32.mrb[0].mxu0
  %v261 = vadd.f32 0.0, %v260
  %v262 = vpop.f32.mrb[0].mxu0
  %v263 = vadd.f32 0.0, %v262
  %v264 = vpop.f32.mrb[0].mxu0
  %v265 = vadd.f32 0.0, %v264
  %v266 = vpop.f32.mrb[0].mxu0
  %v267 = vadd.f32 0.0, %v266
  %268 = vmatprep.mubr.bf16.mxu0 0
  %269 = vmatmul.mubr.bf16.gmra.mrb[0].mxu0 %v168
  %v270 = vpop.f32.mrb[0].mxu0
  %v271 = vadd.f32 0.0, %v270
  %v272 = vpop.f32.mrb[0].mxu0
  %v273 = vadd.f32 0.0, %v272
  %v274 = vpop.f32.mrb[0].mxu0
  %v275 = vadd.f32 0.0, %v274
  %v276 = vpop.f32.mrb[0].mxu0
  %v277 = vadd.f32 0.0, %v276
  %278 = vmatprep.mubr.bf16.mxu0 0
  %279 = vmatmul.mubr.bf16.gmra.mrb[0].mxu0 %v171
  %v280 = vpop.f32.mrb[0].mxu0
  %v281 = vadd.f32 0.0, %v280
  %v282 = vpop.f32.mrb[0].mxu0
  %v283 = vadd.f32 0.0, %v282
  %v284 = vpop.f32.mrb[0].mxu0
  %v285 = vadd.f32 0.0, %v284
  %v286 = vpop.f32.mrb[0].mxu0
  %v287 = vadd.f32 0.0, %v286
  %288 = vmatprep.mubr.bf16.mxu0 0
  %289 = vmatmul.mubr.bf16.gmra.mrb[0].mxu0 %v174
  %v290 = vpop.f32.mrb[0].mxu0
  %v291 = vadd.f32 0.0, %v290
  %v292 = vpop.f32.mrb[0].mxu0
  %v293 = vadd.f32 0.0, %v292
  %v294 = vpop.f32.mrb[0].mxu0
  %v295 = vadd.f32 0.0, %v294
  %v296 = vpop.f32.mrb[0].mxu0
  %v297 = vadd.f32 0.0, %v296
  %298 = vmatprep.mubr.bf16.mxu0 0
  %299 = vmatmul.mubr.bf16.gmra.mrb[0].mxu0 %v177
  %v300 = vpop.f32.mrb[0].mxu0
  %v301 = vadd.f32 0.0, %v300
  %v302 = vpop.f32.mrb[0].mxu0
  %v303 = vadd.f32 0.0, %v302
  %v304 = vpop.f32.mrb[0].mxu0
  %v305 = vadd.f32 0.0, %v304
  %v306 = vpop.f32.mrb[0].mxu0
  %v307 = vadd.f32 0.0, %v306
  %308 = vmatprep.mubr.bf16.mxu0 0
  %309 = vmatmul.mubr.bf16.gmra.mrb[0].mxu0 %v180
  %v310 = vpop.f32.mrb[0].mxu0
  %v311 = vadd.f32 0.0, %v310
  %v312 = vpop.f32.mrb[0].mxu0
  %v313 = vadd.f32 0.0, %v312
  %v314 = vpop.f32.mrb[0].mxu0
  %v315 = vadd.f32 0.0, %v314
  %v316 = vpop.f32.mrb[0].mxu0
  %v317 = vadd.f32 0.0, %v316
  %318 = vmatprep.mubr.bf16.mxu0 0
  %319 = vmatmul.mubr.bf16.gmra.mrb[0].mxu0 %v183
  %v320 = vpop.f32.mrb[0].mxu0
  %v321 = vadd.f32 0.0, %v320
  %v322 = vpop.f32.mrb[0].mxu0
  %v323 = vadd.f32 0.0, %v322
  %v324 = vpop.f32.mrb[0].mxu0
  %v325 = vadd.f32 0.0, %v324
  %v326 = vpop.f32.mrb[0].mxu0
  %v327 = vadd.f32 0.0, %v326
  %328 = vmatprep.mubr.bf16.mxu0 0
  %329 = vmatmul.mubr.bf16.gmra.mrb[0].mxu0 %v186
  %v330 = vpop.f32.mrb[0].mxu0
  %v331 = vadd.f32 0.0, %v330
  %v332 = vpop.f32.mrb[0].mxu0
  %v333 = vadd.f32 0.0, %v332
  %v334 = vpop.f32.mrb[0].mxu0
  %v335 = vadd.f32 0.0, %v334
  %v336 = vpop.f32.mrb[0].mxu0
  %v337 = vadd.f32 0.0, %v336
  %338 = vmatprep.mubr.bf16.mxu0 0
  %339 = vmatmul.mubr.bf16.gmra.mrb[0].mxu0 %v189
  %v340 = vpop.f32.mrb[0].mxu0
  %v341 = vadd.f32 0.0, %v340
  %v342 = vpop.f32.mrb[0].mxu0
  %v343 = vadd.f32 0.0, %v342
  %v344 = vpop.f32.mrb[0].mxu0
  %v345 = vadd.f32 0.0, %v344
  %v346 = vpop.f32.mrb[0].mxu0
  %v347 = vadd.f32 0.0, %v346
  %348 = vmatprep.mubr.bf16.mxu0 0
  %349 = vmatmul.mubr.bf16.gmra.mrb[0].mxu0 %v192
  %v350 = vpop.f32.mrb[0].mxu0
  %v351 = vadd.f32 0.0, %v350
  %v352 = vpop.f32.mrb[0].mxu0
  %v353 = vadd.f32 0.0, %v352
  %v354 = vpop.f32.mrb[0].mxu0
  %v355 = vadd.f32 0.0, %v354
  %v356 = vpop.f32.mrb[0].mxu0
  %v357 = vadd.f32 0.0, %v356
  %358 = vmatprep.mubr.bf16.mxu0 0
  %359 = vmatmul.mubr.bf16.gmra.mrb[0].mxu0 %v195
  %v360 = vpop.f32.mrb[0].mxu0
  %v361 = vadd.f32 0.0, %v360
  %v362 = vpop.f32.mrb[0].mxu0
  %v363 = vadd.f32 0.0, %v362
  %v364 = vpop.f32.mrb[0].mxu0
  %v365 = vadd.f32 0.0, %v364
  %v366 = vpop.f32.mrb[0].mxu0
  %v367 = vadd.f32 0.0, %v366
  %368 = vmatprep.mubr.bf16.mxu0 0
  %369 = vmatmul.mubr.bf16.gmra.mrb[0].mxu0 %v198
  %v370 = vpop.f32.mrb[0].mxu0
  %v371 = vadd.f32 0.0, %v370
  %v372 = vpop.f32.mrb[0].mxu0
  %v373 = vadd.f32 0.0, %v372
  %v374 = vpop.f32.mrb[0].mxu0
  %v375 = vadd.f32 0.0, %v374
  %v376 = vpop.f32.mrb[0].mxu0
  %v377 = vadd.f32 0.0, %v376
  %378 = vmatprep.mubr.bf16.mxu0 0
  %379 = vmatmul.mubr.bf16.gmra.mrb[0].mxu0 %v201
  %v380 = vpop.f32.mrb[0].mxu0
  %v381 = vadd.f32 0.0, %v380
  %v382 = vpop.f32.mrb[0].mxu0
  %v383 = vadd.f32 0.0, %v382
  %v384 = vpop.f32.mrb[0].mxu0
  %v385 = vadd.f32 0.0, %v384
  %v386 = vpop.f32.mrb[0].mxu0
  %v387 = vadd.f32 0.0, %v386
  %388 = vmatprep.mubr.bf16.mxu0 0
  %389 = vmatmul.mubr.bf16.gmra.mrb[0].mxu0 %v204
  %v390 = vpop.f32.mrb[0].mxu0
  %v391 = vadd.f32 0.0, %v390
  %v392 = vpop.f32.mrb[0].mxu0
  %v393 = vadd.f32 0.0, %v392
  %v394 = vpop.f32.mrb[0].mxu0
  %v395 = vadd.f32 0.0, %v394
  %v396 = vpop.f32.mrb[0].mxu0
  %v397 = vadd.f32 0.0, %v396
  %398 = vdwg.mxu0
  %v399 = vadd.f32 %v241, %v245
  %v400 = vadd.f32 %v399, %v251
  %v401 = vadd.f32 %v400, %v255
  %v402 = vadd.f32 %v401, %v261
  %v403 = vadd.f32 %v402, %v265
  %v404 = vadd.f32 %v403, %v271
  %v405 = vadd.f32 %v404, %v275
  %v406 = vadd.f32 %v405, %v281
  %v407 = vadd.f32 %v406, %v285
  %v408 = vadd.f32 %v407, %v291
  %v409 = vadd.f32 %v408, %v295
  %v410 = vadd.f32 %v409, %v301
  %v411 = vadd.f32 %v410, %v305
  %v412 = vadd.f32 %v411, %v311
  %v413 = vadd.f32 %v412, %v315
  %v414 = vadd.f32 %v413, %v321
  %v415 = vadd.f32 %v414, %v325
  %v416 = vadd.f32 %v415, %v331
  %v417 = vadd.f32 %v416, %v335
  %v418 = vadd.f32 %v417, %v341
  %v419 = vadd.f32 %v418, %v345
  %v420 = vadd.f32 %v419, %v351
  %v421 = vadd.f32 %v420, %v355
  %v422 = vadd.f32 %v421, %v361
  %v423 = vadd.f32 %v422, %v365
  %v424 = vadd.f32 %v423, %v371
  %v425 = vadd.f32 %v424, %v375
  %v426 = vadd.f32 %v425, %v381
  %v427 = vadd.f32 %v426, %v385
  %v428 = vadd.f32 %v427, %v391
  %v429 = vadd.f32 %v428, %v395
  %v430 = vrot.slane %v429, 4
  %v431 = vadd.f32 %v429, %v430
  %v432 = vrot.slane %v431, 2
  %v433 = vadd.f32 %v431, %v432
  %v434 = vrot.slane %v433, 1
  %v435 = vadd.f32 %v433, %v434
  %v436 = vadd.f32 %v243, %v247
  %v437 = vadd.f32 %v436, %v253
  %v438 = vadd.f32 %v437, %v257
  %v439 = vadd.f32 %v438, %v263
  %v440 = vadd.f32 %v439, %v267
  %v441 = vadd.f32 %v440, %v273
  %v442 = vadd.f32 %v441, %v277
  %v443 = vadd.f32 %v442, %v283
  %v444 = vadd.f32 %v443, %v287
  %v445 = vadd.f32 %v444, %v293
  %v446 = vadd.f32 %v445, %v297
  %v447 = vadd.f32 %v446, %v303
  %v448 = vadd.f32 %v447, %v307
  %v449 = vadd.f32 %v448, %v313
  %v450 = vadd.f32 %v449, %v317
  %v451 = vadd.f32 %v450, %v323
  %v452 = vadd.f32 %v451, %v327
  %v453 = vadd.f32 %v452, %v333
  %v454 = vadd.f32 %v453, %v337
  %v455 = vadd.f32 %v454, %v343
  %v456 = vadd.f32 %v455, %v347
  %v457 = vadd.f32 %v456, %v353
  %v458 = vadd.f32 %v457, %v357
  %v459 = vadd.f32 %v458, %v363
  %v460 = vadd.f32 %v459, %v367
  %v461 = vadd.f32 %v460, %v373
  %v462 = vadd.f32 %v461, %v377
  %v463 = vadd.f32 %v462, %v383
  %v464 = vadd.f32 %v463, %v387
  %v465 = vadd.f32 %v464, %v393
  %v466 = vadd.f32 %v465, %v397
  %v467 = vrot.slane %v466, 4
  %v468 = vadd.f32 %v466, %v467
  %v469 = vrot.slane %v468, 2
  %v470 = vadd.f32 %v468, %v469
  %v471 = vrot.slane %v470, 1
  %v472 = vadd.f32 %v470, %v471
  %v473 = vrcp.pop 256.0
  %v474 = vmul.f32 %v435, %v473
  %v475 = vmul.f32 %v472, %v473
  %v476 = vmul.f32 %v241, %v241
  %v477 = vmul.f32 %v243, %v243
  %v478 = vmul.f32 %v245, %v245
  %v479 = vmul.f32 %v247, %v247
  %v480 = vmul.f32 %v251, %v251
  %v481 = vmul.f32 %v253, %v253
  %v482 = vmul.f32 %v255, %v255
  %v483 = vmul.f32 %v257, %v257
  %v484 = vmul.f32 %v261, %v261
  %v485 = vmul.f32 %v263, %v263
  %v486 = vmul.f32 %v265, %v265
  %v487 = vmul.f32 %v267, %v267
  %v488 = vmul.f32 %v271, %v271
  %v489 = vmul.f32 %v273, %v273
  %v490 = vmul.f32 %v275, %v275
  %v491 = vmul.f32 %v277, %v277
  %v492 = vmul.f32 %v281, %v281
  %v493 = vmul.f32 %v283, %v283
  %v494 = vmul.f32 %v285, %v285
  %v495 = vmul.f32 %v287, %v287
  %v496 = vmul.f32 %v291, %v291
  %v497 = vmul.f32 %v293, %v293
  %v498 = vmul.f32 %v295, %v295
  %v499 = vmul.f32 %v297, %v297
  %v500 = vmul.f32 %v301, %v301
  %v501 = vmul.f32 %v303, %v303
  %v502 = vmul.f32 %v305, %v305
  %v503 = vmul.f32 %v307, %v307
  %v504 = vmul.f32 %v311, %v311
  %v505 = vmul.f32 %v313, %v313
  %v506 = vmul.f32 %v315, %v315
  %v507 = vmul.f32 %v317, %v317
  %v508 = vmul.f32 %v321, %v321
  %v509 = vmul.f32 %v323, %v323
  %v510 = vmul.f32 %v325, %v325
  %v511 = vmul.f32 %v327, %v327
  %v512 = vmul.f32 %v331, %v331
  %v513 = vmul.f32 %v333, %v333
  %v514 = vmul.f32 %v335, %v335
  %v515 = vmul.f32 %v337, %v337
  %v516 = vmul.f32 %v341, %v341
  %v517 = vmul.f32 %v343, %v343
  %v518 = vmul.f32 %v345, %v345
  %v519 = vmul.f32 %v347, %v347
  %v520 = vmul.f32 %v351, %v351
  %v521 = vmul.f32 %v353, %v353
  %v522 = vmul.f32 %v355, %v355
  %v523 = vmul.f32 %v357, %v357
  %v524 = vmul.f32 %v361, %v361
  %v525 = vmul.f32 %v363, %v363
  %v526 = vmul.f32 %v365, %v365
  %v527 = vmul.f32 %v367, %v367
  %v528 = vmul.f32 %v371, %v371
  %v529 = vmul.f32 %v373, %v373
  %v530 = vmul.f32 %v375, %v375
  %v531 = vmul.f32 %v377, %v377
  %v532 = vmul.f32 %v381, %v381
  %v533 = vmul.f32 %v383, %v383
  %v534 = vmul.f32 %v385, %v385
  %v535 = vmul.f32 %v387, %v387
  %v536 = vmul.f32 %v391, %v391
  %v537 = vmul.f32 %v393, %v393
  %v538 = vmul.f32 %v395, %v395
  %v539 = vmul.f32 %v397, %v397
  %v540 = vadd.f32 %v476, %v478
  %v541 = vadd.f32 %v540, %v480
  %v542 = vadd.f32 %v541, %v482
  %v543 = vadd.f32 %v542, %v484
  %v544 = vadd.f32 %v543, %v486
  %v545 = vadd.f32 %v544, %v488
  %v546 = vadd.f32 %v545, %v490
  %v547 = vadd.f32 %v546, %v492
  %v548 = vadd.f32 %v547, %v494
  %v549 = vadd.f32 %v548, %v496
  %v550 = vadd.f32 %v549, %v498
  %v551 = vadd.f32 %v550, %v500
  %v552 = vadd.f32 %v551, %v502
  %v553 = vadd.f32 %v552, %v504
  %v554 = vadd.f32 %v553, %v506
  %v555 = vadd.f32 %v554, %v508
  %v556 = vadd.f32 %v555, %v510
  %v557 = vadd.f32 %v556, %v512
  %v558 = vadd.f32 %v557, %v514
  %v559 = vadd.f32 %v558, %v516
  %v560 = vadd.f32 %v559, %v518
  %v561 = vadd.f32 %v560, %v520
  %v562 = vadd.f32 %v561, %v522
  %v563 = vadd.f32 %v562, %v524
  %v564 = vadd.f32 %v563, %v526
  %v565 = vadd.f32 %v564, %v528
  %v566 = vadd.f32 %v565, %v530
  %v567 = vadd.f32 %v566, %v532
  %v568 = vadd.f32 %v567, %v534
  %v569 = vadd.f32 %v568, %v536
  %v570 = vadd.f32 %v569, %v538
  %v571 = vrot.slane %v570, 4
  %v572 = vadd.f32 %v570, %v571
  %v573 = vrot.slane %v572, 2
  %v574 = vadd.f32 %v572, %v573
  %v575 = vrot.slane %v574, 1
  %v576 = vadd.f32 %v574, %v575
  %v577 = vadd.f32 %v477, %v479
  %v578 = vadd.f32 %v577, %v481
  %v579 = vadd.f32 %v578, %v483
  %v580 = vadd.f32 %v579, %v485
  %v581 = vadd.f32 %v580, %v487
  %v582 = vadd.f32 %v581, %v489
  %v583 = vadd.f32 %v582, %v491
  %v584 = vadd.f32 %v583, %v493
  %v585 = vadd.f32 %v584, %v495
  %v586 = vadd.f32 %v585, %v497
  %v587 = vadd.f32 %v586, %v499
  %v588 = vadd.f32 %v587, %v501
  %v589 = vadd.f32 %v588, %v503
  %v590 = vadd.f32 %v589, %v505
  %v591 = vadd.f32 %v590, %v507
  %v592 = vadd.f32 %v591, %v509
  %v593 = vadd.f32 %v592, %v511
  %v594 = vadd.f32 %v593, %v513
  %v595 = vadd.f32 %v594, %v515
  %v596 = vadd.f32 %v595, %v517
  %v597 = vadd.f32 %v596, %v519
  %v598 = vadd.f32 %v597, %v521
  %v599 = vadd.f32 %v598, %v523
  %v600 = vadd.f32 %v599, %v525
  %v601 = vadd.f32 %v600, %v527
  %v602 = vadd.f32 %v601, %v529
  %v603 = vadd.f32 %v602, %v531
  %v604 = vadd.f32 %v603, %v533
  %v605 = vadd.f32 %v604, %v535
  %v606 = vadd.f32 %v605, %v537
  %v607 = vadd.f32 %v606, %v539
  %v608 = vrot.slane %v607, 4
  %v609 = vadd.f32 %v607, %v608
  %v610 = vrot.slane %v609, 2
  %v611 = vadd.f32 %v609, %v610
  %v612 = vrot.slane %v611, 1
  %v613 = vadd.f32 %v611, %v612
  %v614 = vmul.f32 %v576, %v473
  %v615 = vmul.f32 %v613, %v473
  %v616 = vmul.f32 %v474, %v474
  %v617 = vmul.f32 %v475, %v475
  %v618 = vsub.f32 %v614, %v616
  %v619 = vsub.f32 %v615, %v617
  %v620 = vmax.f32 %v618, 0.0
  %v621 = vmax.f32 %v619, 0.0
  %v622 = vadd.f32 %v620, 1e-05
  %v623 = vadd.f32 %v621, 1e-05
  %v624 = vrsqrt.pop %v622
  %v625 = vrsqrt.pop %v623
  %v626 = vsub.f32 0.0, %v474
  %v627 = vsub.f32 0.0, %v475
  %v628 = vmul.f32 %v626, %v624
  %v629 = vmul.f32 %v627, %v625
  %v630 = vmul.f32 %v241, %v624
  %v631 = vmul.f32 %v243, %v625
  %v632 = vmul.f32 %v245, %v624
  %v633 = vmul.f32 %v247, %v625
  %v634 = vmul.f32 %v251, %v624
  %v635 = vmul.f32 %v253, %v625
  %v636 = vmul.f32 %v255, %v624
  %v637 = vmul.f32 %v257, %v625
  %v638 = vmul.f32 %v261, %v624
  %v639 = vmul.f32 %v263, %v625
  %v640 = vmul.f32 %v265, %v624
  %v641 = vmul.f32 %v267, %v625
  %v642 = vmul.f32 %v271, %v624
  %v643 = vmul.f32 %v273, %v625
  %v644 = vmul.f32 %v275, %v624
  %v645 = vmul.f32 %v277, %v625
  %v646 = vmul.f32 %v281, %v624
  %v647 = vmul.f32 %v283, %v625
  %v648 = vmul.f32 %v285, %v624
  %v649 = vmul.f32 %v287, %v625
  %v650 = vmul.f32 %v291, %v624
  %v651 = vmul.f32 %v293, %v625
  %v652 = vmul.f32 %v295, %v624
  %v653 = vmul.f32 %v297, %v625
  %v654 = vmul.f32 %v301, %v624
  %v655 = vmul.f32 %v303, %v625
  %v656 = vmul.f32 %v305, %v624
  %v657 = vmul.f32 %v307, %v625
  %v658 = vmul.f32 %v311, %v624
  %v659 = vmul.f32 %v313, %v625
  %v660 = vmul.f32 %v315, %v624
  %v661 = vmul.f32 %v317, %v625
  %v662 = vmul.f32 %v321, %v624
  %v663 = vmul.f32 %v323, %v625
  %v664 = vmul.f32 %v325, %v624
  %v665 = vmul.f32 %v327, %v625
  %v666 = vmul.f32 %v331, %v624
  %v667 = vmul.f32 %v333, %v625
  %v668 = vmul.f32 %v335, %v624
  %v669 = vmul.f32 %v337, %v625
  %v670 = vmul.f32 %v341, %v624
  %v671 = vmul.f32 %v343, %v625
  %v672 = vmul.f32 %v345, %v624
  %v673 = vmul.f32 %v347, %v625
  %v674 = vmul.f32 %v351, %v624
  %v675 = vmul.f32 %v353, %v625
  %v676 = vmul.f32 %v355, %v624
  %v677 = vmul.f32 %v357, %v625
  %v678 = vmul.f32 %v361, %v624
  %v679 = vmul.f32 %v363, %v625
  %v680 = vmul.f32 %v365, %v624
  %v681 = vmul.f32 %v367, %v625
  %v682 = vmul.f32 %v371, %v624
  %v683 = vmul.f32 %v373, %v625
  %v684 = vmul.f32 %v375, %v624
  %v685 = vmul.f32 %v377, %v625
  %v686 = vmul.f32 %v381, %v624
  %v687 = vmul.f32 %v383, %v625
  %v688 = vmul.f32 %v385, %v624
  %v689 = vmul.f32 %v387, %v625
  %v690 = vmul.f32 %v391, %v624
  %v691 = vmul.f32 %v393, %v625
  %v692 = vmul.f32 %v395, %v624
  %v693 = vmul.f32 %v397, %v625
  %v694 = vadd.f32 %v630, %v628
  %v695 = vadd.f32 %v631, %v629
  %v696 = vadd.f32 %v632, %v628
  %v697 = vadd.f32 %v633, %v629
  %v698 = vadd.f32 %v634, %v628
  %v699 = vadd.f32 %v635, %v629
  %v700 = vadd.f32 %v636, %v628
  %v701 = vadd.f32 %v637, %v629
  %v702 = vadd.f32 %v638, %v628
  %v703 = vadd.f32 %v639, %v629
  %v704 = vadd.f32 %v640, %v628
  %v705 = vadd.f32 %v641, %v629
  %v706 = vadd.f32 %v642, %v628
  %v707 = vadd.f32 %v643, %v629
  %v708 = vadd.f32 %v644, %v628
  %v709 = vadd.f32 %v645, %v629
  %v710 = vadd.f32 %v646, %v628
  %v711 = vadd.f32 %v647, %v629
  %v712 = vadd.f32 %v648, %v628
  %v713 = vadd.f32 %v649, %v629
  %v714 = vadd.f32 %v650, %v628
  %v715 = vadd.f32 %v651, %v629
  %v716 = vadd.f32 %v652, %v628
  %v717 = vadd.f32 %v653, %v629
  %v718 = vadd.f32 %v654, %v628
  %v719 = vadd.f32 %v655, %v629
  %v720 = vadd.f32 %v656, %v628
  %v721 = vadd.f32 %v657, %v629
  %v722 = vadd.f32 %v658, %v628
  %v723 = vadd.f32 %v659, %v629
  %v724 = vadd.f32 %v660, %v628
  %v725 = vadd.f32 %v661, %v629
  %v726 = vadd.f32 %v662, %v628
  %v727 = vadd.f32 %v663, %v629
  %v728 = vadd.f32 %v664, %v628
  %v729 = vadd.f32 %v665, %v629
  %v730 = vadd.f32 %v666, %v628
  %v731 = vadd.f32 %v667, %v629
  %v732 = vadd.f32 %v668, %v628
  %v733 = vadd.f32 %v669, %v629
  %v734 = vadd.f32 %v670, %v628
  %v735 = vadd.f32 %v671, %v629
  %v736 = vadd.f32 %v672, %v628
  %v737 = vadd.f32 %v673, %v629
  %v738 = vadd.f32 %v674, %v628
  %v739 = vadd.f32 %v675, %v629
  %v740 = vadd.f32 %v676, %v628
  %v741 = vadd.f32 %v677, %v629
  %v742 = vadd.f32 %v678, %v628
  %v743 = vadd.f32 %v679, %v629
  %v744 = vadd.f32 %v680, %v628
  %v745 = vadd.f32 %v681, %v629
  %v746 = vadd.f32 %v682, %v628
  %v747 = vadd.f32 %v683, %v629
  %v748 = vadd.f32 %v684, %v628
  %v749 = vadd.f32 %v685, %v629
  %v750 = vadd.f32 %v686, %v628
  %v751 = vadd.f32 %v687, %v629
  %v752 = vadd.f32 %v688, %v628
  %v753 = vadd.f32 %v689, %v629
  %v754 = vadd.f32 %v690, %v628
  %v755 = vadd.f32 %v691, %v629
  %v756 = vadd.f32 %v692, %v628
  %v757 = vadd.f32 %v693, %v629
  %v758 = vmax.f32 %v694, 0.0
  %v759 = vmax.f32 %v695, 0.0
  %v760 = vmax.f32 %v696, 0.0
  %v761 = vmax.f32 %v697, 0.0
  %v762 = vmax.f32 %v698, 0.0
  %v763 = vmax.f32 %v699, 0.0
  %v764 = vmax.f32 %v700, 0.0
  %v765 = vmax.f32 %v701, 0.0
  %v766 = vmax.f32 %v702, 0.0
  %v767 = vmax.f32 %v703, 0.0
  %v768 = vmax.f32 %v704, 0.0
  %v769 = vmax.f32 %v705, 0.0
  %v770 = vmax.f32 %v706, 0.0
  %v771 = vmax.f32 %v707, 0.0
  %v772 = vmax.f32 %v708, 0.0
  %v773 = vmax.f32 %v709, 0.0
  %v774 = vmax.f32 %v710, 0.0
  %v775 = vmax.f32 %v711, 0.0
  %v776 = vmax.f32 %v712, 0.0
  %v777 = vmax.f32 %v713, 0.0
  %v778 = vmax.f32 %v714, 0.0
  %v779 = vmax.f32 %v715, 0.0
  %v780 = vmax.f32 %v716, 0.0
  %v781 = vmax.f32 %v717, 0.0
  %v782 = vmax.f32 %v718, 0.0
  %v783 = vmax.f32 %v719, 0.0
  %v784 = vmax.f32 %v720, 0.0
  %v785 = vmax.f32 %v721, 0.0
  %v786 = vmax.f32 %v722, 0.0
  %v787 = vmax.f32 %v723, 0.0
  %v788 = vmax.f32 %v724, 0.0
  %v789 = vmax.f32 %v725, 0.0
  %v790 = vmax.f32 %v726, 0.0
  %v791 = vmax.f32 %v727, 0.0
  %v792 = vmax.f32 %v728, 0.0
  %v793 = vmax.f32 %v729, 0.0
  %v794 = vmax.f32 %v730, 0.0
  %v795 = vmax.f32 %v731, 0.0
  %v796 = vmax.f32 %v732, 0.0
  %v797 = vmax.f32 %v733, 0.0
  %v798 = vmax.f32 %v734, 0.0
  %v799 = vmax.f32 %v735, 0.0
  %v800 = vmax.f32 %v736, 0.0
  %v801 = vmax.f32 %v737, 0.0
  %v802 = vmax.f32 %v738, 0.0
  %v803 = vmax.f32 %v739, 0.0
  %v804 = vmax.f32 %v740, 0.0
  %v805 = vmax.f32 %v741, 0.0
  %v806 = vmax.f32 %v742, 0.0
  %v807 = vmax.f32 %v743, 0.0
  %v808 = vmax.f32 %v744, 0.0
  %v809 = vmax.f32 %v745, 0.0
  %v810 = vmax.f32 %v746, 0.0
  %v811 = vmax.f32 %v747, 0.0
  %v812 = vmax.f32 %v748, 0.0
  %v813 = vmax.f32 %v749, 0.0
  %v814 = vmax.f32 %v750, 0.0
  %v815 = vmax.f32 %v751, 0.0
  %v816 = vmax.f32 %v752, 0.0
  %v817 = vmax.f32 %v753, 0.0
  %v818 = vmax.f32 %v754, 0.0
  %v819 = vmax.f32 %v755, 0.0
  %v820 = vmax.f32 %v756, 0.0
  %v821 = vmax.f32 %v757, 0.0
  %v822 = vld [vmem:[%s2] sm:$0xff]
  %v823 = vld [vmem:[%s2 + $0x8] sm:$0xff]
  %v824 = vld [vmem:[%s2 + $0x10] sm:$0xff]
  %v825 = vld [vmem:[%s2 + $0x18] sm:$0xff]
  %v826 = vld [vmem:[%s2 + $0x20] sm:$0xff]
  %v827 = vld [vmem:[%s2 + $0x28] sm:$0xff]
  %v828 = vld [vmem:[%s2 + $0x30] sm:$0xff]
  %v829 = vld [vmem:[%s2 + $0x38] sm:$0xff]
  %v830 = vld [vmem:[%s2 + $0x40] sm:$0xff]
  %v831 = vld [vmem:[%s2 + $0x48] sm:$0xff]
  %v832 = vld [vmem:[%s2 + $0x50] sm:$0xff]
  %v833 = vld [vmem:[%s2 + $0x58] sm:$0xff]
  %v834 = vld [vmem:[%s2 + $0x60] sm:$0xff]
  %v835 = vld [vmem:[%s2 + $0x68] sm:$0xff]
  %v836 = vld [vmem:[%s2 + $0x70] sm:$0xff]
  %v837 = vld [vmem:[%s2 + $0x78] sm:$0xff]
  %v838 = vld [vmem:[%s2 + $0x80] sm:$0xff]
  %v839 = vld [vmem:[%s2 + $0x88] sm:$0xff]
  %v840 = vld [vmem:[%s2 + $0x90] sm:$0xff]
  %v841 = vld [vmem:[%s2 + $0x98] sm:$0xff]
  %v842 = vld [vmem:[%s2 + $0xa0] sm:$0xff]
  %v843 = vld [vmem:[%s2 + $0xa8] sm:$0xff]
  %v844 = vld [vmem:[%s2 + $0xb0] sm:$0xff]
  %v845 = vld [vmem:[%s2 + $0xb8] sm:$0xff]
  %v846 = vld [vmem:[%s2 + $0xc0] sm:$0xff]
  %v847 = vld [vmem:[%s2 + $0xc8] sm:$0xff]
  %v848 = vld [vmem:[%s2 + $0xd0] sm:$0xff]
  %v849 = vld [vmem:[%s2 + $0xd8] sm:$0xff]
  %v850 = vld [vmem:[%s2 + $0xe0] sm:$0xff]
  %v851 = vld [vmem:[%s2 + $0xe8] sm:$0xff]
  %v852 = vld [vmem:[%s2 + $0xf0] sm:$0xff]
  %v853 = vld [vmem:[%s2 + $0xf8] sm:$0xff]
  %854 = vmatprep.subr.mxu0 0.0
  %855 = vmatpush1.msra.mxu0 %v822
  %856 = vmatprep.subr.mxu0 0.0
  %857 = vmatpush1.msra.mxu0 %v823
  %858 = vmatprep.subr.mxu0 0.0
  %859 = vmatpush1.msra.mxu0 %v824
  %860 = vmatprep.subr.mxu0 0.0
  %861 = vmatpush1.msra.mxu0 %v825
  %862 = vmatprep.subr.mxu0 0.0
  %863 = vmatpush1.msra.mxu0 %v826
  %864 = vmatprep.subr.mxu0 0.0
  %865 = vmatpush1.msra.mxu0 %v827
  %866 = vmatprep.subr.mxu0 0.0
  %867 = vmatpush1.msra.mxu0 %v828
  %868 = vmatprep.subr.mxu0 0.0
  %869 = vmatpush1.msra.mxu0 %v829
  %870 = vmatprep.subr.mxu0 0.0
  %871 = vmatpush1.msra.mxu0 %v830
  %872 = vmatprep.subr.mxu0 0.0
  %873 = vmatpush1.msra.mxu0 %v831
  %874 = vmatprep.subr.mxu0 0.0
  %875 = vmatpush1.msra.mxu0 %v832
  %876 = vmatprep.subr.mxu0 0.0
  %877 = vmatpush1.msra.mxu0 %v833
  %878 = vmatprep.subr.mxu0 0.0
  %879 = vmatpush1.msra.mxu0 %v834
  %880 = vmatprep.subr.mxu0 0.0
  %881 = vmatpush1.msra.mxu0 %v835
  %882 = vmatprep.subr.mxu0 0.0
  %883 = vmatpush1.msra.mxu0 %v836
  %884 = vmatprep.subr.mxu0 0.0
  %885 = vmatpush1.msra.mxu0 %v837
  %886 = vmatprep.subr.mxu0 0.0
  %887 = vmatpush1.msra.mxu0 %v838
  %888 = vmatprep.subr.mxu0 0.0
  %889 = vmatpush1.msra.mxu0 %v839
  %890 = vmatprep.subr.mxu0 0.0
  %891 = vmatpush1.msra.mxu0 %v840
  %892 = vmatprep.subr.mxu0 0.0
  %893 = vmatpush1.msra.mxu0 %v841
  %894 = vmatprep.subr.mxu0 0.0
  %895 = vmatpush1.msra.mxu0 %v842
  %896 = vmatprep.subr.mxu0 0.0
  %897 = vmatpush1.msra.mxu0 %v843
  %898 = vmatprep.subr.mxu0 0.0
  %899 = vmatpush1.msra.mxu0 %v844
  %900 = vmatprep.subr.mxu0 0.0
  %901 = vmatpush1.msra.mxu0 %v845
  %902 = vmatprep.subr.mxu0 0.0
  %903 = vmatpush1.msra.mxu0 %v846
  %904 = vmatprep.subr.mxu0 0.0
  %905 = vmatpush1.msra.mxu0 %v847
  %906 = vmatprep.subr.mxu0 0.0
  %907 = vmatpush1.msra.mxu0 %v848
  %908 = vmatprep.subr.mxu0 0.0
  %909 = vmatpush1.msra.mxu0 %v849
  %910 = vmatprep.subr.mxu0 0.0
  %911 = vmatpush1.msra.mxu0 %v850
  %912 = vmatprep.subr.mxu0 0.0
  %913 = vmatpush1.msra.mxu0 %v851
  %914 = vmatprep.subr.mxu0 0.0
  %915 = vmatpush1.msra.mxu0 %v852
  %916 = vmatprep.subr.mxu0 0.0
  %917 = vmatpush1.msra.mxu0 %v853
  %918 = vmatprep.mubr.f32.mxu0 %v759
  %919 = vmatmul.mubr.f32.gmra.mrb[0].mxu0 %v758
  %v920 = vpop.f32.mrb[0].mxu0
  %v921 = vadd.f32 0.0, %v920
  %v922 = vpop.f32.mrb[0].mxu0
  %923 = vmatprep.mubr.f32.mxu0 %v761
  %924 = vmatmul.mubr.f32.gmra.mrb[0].mxu0 %v760
  %v925 = vpop.f32.mrb[0].mxu0
  %v926 = vadd.f32 0.0, %v925
  %v927 = vpop.f32.mrb[0].mxu0
  %928 = vmatprep.mubr.f32.mxu0 %v763
  %929 = vmatmul.mubr.f32.gmra.mrb[0].mxu0 %v762
  %v930 = vpop.f32.mrb[0].mxu0
  %v931 = vadd.f32 0.0, %v930
  %v932 = vpop.f32.mrb[0].mxu0
  %933 = vmatprep.mubr.f32.mxu0 %v765
  %934 = vmatmul.mubr.f32.gmra.mrb[0].mxu0 %v764
  %v935 = vpop.f32.mrb[0].mxu0
  %v936 = vadd.f32 0.0, %v935
  %v937 = vpop.f32.mrb[0].mxu0
  %938 = vmatprep.mubr.f32.mxu0 %v767
  %939 = vmatmul.mubr.f32.gmra.mrb[0].mxu0 %v766
  %v940 = vpop.f32.mrb[0].mxu0
  %v941 = vadd.f32 0.0, %v940
  %v942 = vpop.f32.mrb[0].mxu0
  %943 = vmatprep.mubr.f32.mxu0 %v769
  %944 = vmatmul.mubr.f32.gmra.mrb[0].mxu0 %v768
  %v945 = vpop.f32.mrb[0].mxu0
  %v946 = vadd.f32 0.0, %v945
  %v947 = vpop.f32.mrb[0].mxu0
  %948 = vmatprep.mubr.f32.mxu0 %v771
  %949 = vmatmul.mubr.f32.gmra.mrb[0].mxu0 %v770
  %v950 = vpop.f32.mrb[0].mxu0
  %v951 = vadd.f32 0.0, %v950
  %v952 = vpop.f32.mrb[0].mxu0
  %953 = vmatprep.mubr.f32.mxu0 %v773
  %954 = vmatmul.mubr.f32.gmra.mrb[0].mxu0 %v772
  %v955 = vpop.f32.mrb[0].mxu0
  %v956 = vadd.f32 0.0, %v955
  %v957 = vpop.f32.mrb[0].mxu0
  %958 = vmatprep.mubr.f32.mxu0 %v775
  %959 = vmatmul.mubr.f32.gmra.mrb[0].mxu0 %v774
  %v960 = vpop.f32.mrb[0].mxu0
  %v961 = vadd.f32 0.0, %v960
  %v962 = vpop.f32.mrb[0].mxu0
  %963 = vmatprep.mubr.f32.mxu0 %v777
  %964 = vmatmul.mubr.f32.gmra.mrb[0].mxu0 %v776
  %v965 = vpop.f32.mrb[0].mxu0
  %v966 = vadd.f32 0.0, %v965
  %v967 = vpop.f32.mrb[0].mxu0
  %968 = vmatprep.mubr.f32.mxu0 %v779
  %969 = vmatmul.mubr.f32.gmra.mrb[0].mxu0 %v778
  %v970 = vpop.f32.mrb[0].mxu0
  %v971 = vadd.f32 0.0, %v970
  %v972 = vpop.f32.mrb[0].mxu0
  %973 = vmatprep.mubr.f32.mxu0 %v781
  %974 = vmatmul.mubr.f32.gmra.mrb[0].mxu0 %v780
  %v975 = vpop.f32.mrb[0].mxu0
  %v976 = vadd.f32 0.0, %v975
  %v977 = vpop.f32.mrb[0].mxu0
  %978 = vmatprep.mubr.f32.mxu0 %v783
  %979 = vmatmul.mubr.f32.gmra.mrb[0].mxu0 %v782
  %v980 = vpop.f32.mrb[0].mxu0
  %v981 = vadd.f32 0.0, %v980
  %v982 = vpop.f32.mrb[0].mxu0
  %983 = vmatprep.mubr.f32.mxu0 %v785
  %984 = vmatmul.mubr.f32.gmra.mrb[0].mxu0 %v784
  %v985 = vpop.f32.mrb[0].mxu0
  %v986 = vadd.f32 0.0, %v985
  %v987 = vpop.f32.mrb[0].mxu0
  %988 = vmatprep.mubr.f32.mxu0 %v787
  %989 = vmatmul.mubr.f32.gmra.mrb[0].mxu0 %v786
  %v990 = vpop.f32.mrb[0].mxu0
  %v991 = vadd.f32 0.0, %v990
  %v992 = vpop.f32.mrb[0].mxu0
  %993 = vmatprep.mubr.f32.mxu0 %v789
  %994 = vmatmul.mubr.f32.gmra.mrb[0].mxu0 %v788
  %v995 = vpop.f32.mrb[0].mxu0
  %v996 = vadd.f32 0.0, %v995
  %v997 = vpop.f32.mrb[0].mxu0
  %998 = vmatprep.mubr.f32.mxu0 %v791
  %999 = vmatmul.mubr.f32.gmra.mrb[0].mxu0 %v790
  %v1000 = vpop.f32.mrb[0].mxu0
  %v1001 = vadd.f32 0.0, %v1000
  %v1002 = vpop.f32.mrb[0].mxu0
  %1003 = vmatprep.mubr.f32.mxu0 %v793
  %1004 = vmatmul.mubr.f32.gmra.mrb[0].mxu0 %v792
  %v1005 = vpop.f32.mrb[0].mxu0
  %v1006 = vadd.f32 0.0, %v1005
  %v1007 = vpop.f32.mrb[0].mxu0
  %1008 = vmatprep.mubr.f32.mxu0 %v795
  %1009 = vmatmul.mubr.f32.gmra.mrb[0].mxu0 %v794
  %v1010 = vpop.f32.mrb[0].mxu0
  %v1011 = vadd.f32 0.0, %v1010
  %v1012 = vpop.f32.mrb[0].mxu0
  %1013 = vmatprep.mubr.f32.mxu0 %v797
  %1014 = vmatmul.mubr.f32.gmra.mrb[0].mxu0 %v796
  %v1015 = vpop.f32.mrb[0].mxu0
  %v1016 = vadd.f32 0.0, %v1015
  %v1017 = vpop.f32.mrb[0].mxu0
  %1018 = vmatprep.mubr.f32.mxu0 %v799
  %1019 = vmatmul.mubr.f32.gmra.mrb[0].mxu0 %v798
  %v1020 = vpop.f32.mrb[0].mxu0
  %v1021 = vadd.f32 0.0, %v1020
  %v1022 = vpop.f32.mrb[0].mxu0
  %1023 = vmatprep.mubr.f32.mxu0 %v801
  %1024 = vmatmul.mubr.f32.gmra.mrb[0].mxu0 %v800
  %v1025 = vpop.f32.mrb[0].mxu0
  %v1026 = vadd.f32 0.0, %v1025
  %v1027 = vpop.f32.mrb[0].mxu0
  %1028 = vmatprep.mubr.f32.mxu0 %v803
  %1029 = vmatmul.mubr.f32.gmra.mrb[0].mxu0 %v802
  %v1030 = vpop.f32.mrb[0].mxu0
  %v1031 = vadd.f32 0.0, %v1030
  %v1032 = vpop.f32.mrb[0].mxu0
  %1033 = vmatprep.mubr.f32.mxu0 %v805
  %1034 = vmatmul.mubr.f32.gmra.mrb[0].mxu0 %v804
  %v1035 = vpop.f32.mrb[0].mxu0
  %v1036 = vadd.f32 0.0, %v1035
  %v1037 = vpop.f32.mrb[0].mxu0
  %1038 = vmatprep.mubr.f32.mxu0 %v807
  %1039 = vmatmul.mubr.f32.gmra.mrb[0].mxu0 %v806
  %v1040 = vpop.f32.mrb[0].mxu0
  %v1041 = vadd.f32 0.0, %v1040
  %v1042 = vpop.f32.mrb[0].mxu0
  %1043 = vmatprep.mubr.f32.mxu0 %v809
  %1044 = vmatmul.mubr.f32.gmra.mrb[0].mxu0 %v808
  %v1045 = vpop.f32.mrb[0].mxu0
  %v1046 = vadd.f32 0.0, %v1045
  %v1047 = vpop.f32.mrb[0].mxu0
  %1048 = vmatprep.mubr.f32.mxu0 %v811
  %1049 = vmatmul.mubr.f32.gmra.mrb[0].mxu0 %v810
  %v1050 = vpop.f32.mrb[0].mxu0
  %v1051 = vadd.f32 0.0, %v1050
  %v1052 = vpop.f32.mrb[0].mxu0
  %1053 = vmatprep.mubr.f32.mxu0 %v813
  %1054 = vmatmul.mubr.f32.gmra.mrb[0].mxu0 %v812
  %v1055 = vpop.f32.mrb[0].mxu0
  %v1056 = vadd.f32 0.0, %v1055
  %v1057 = vpop.f32.mrb[0].mxu0
  %1058 = vmatprep.mubr.f32.mxu0 %v815
  %1059 = vmatmul.mubr.f32.gmra.mrb[0].mxu0 %v814
  %v1060 = vpop.f32.mrb[0].mxu0
  %v1061 = vadd.f32 0.0, %v1060
  %v1062 = vpop.f32.mrb[0].mxu0
  %1063 = vmatprep.mubr.f32.mxu0 %v817
  %1064 = vmatmul.mubr.f32.gmra.mrb[0].mxu0 %v816
  %v1065 = vpop.f32.mrb[0].mxu0
  %v1066 = vadd.f32 0.0, %v1065
  %v1067 = vpop.f32.mrb[0].mxu0
  %1068 = vmatprep.mubr.f32.mxu0 %v819
  %1069 = vmatmul.mubr.f32.gmra.mrb[0].mxu0 %v818
  %v1070 = vpop.f32.mrb[0].mxu0
  %v1071 = vadd.f32 0.0, %v1070
  %v1072 = vpop.f32.mrb[0].mxu0
  %1073 = vmatprep.mubr.f32.mxu0 %v821
  %1074 = vmatmul.mubr.f32.gmra.mrb[0].mxu0 %v820
  %v1075 = vpop.f32.mrb[0].mxu0
  %v1076 = vadd.f32 0.0, %v1075
  %v1077 = vpop.f32.mrb[0].mxu0
  %1078 = vdwg.mxu0
  %v1079 = vadd.f32 %v921, %v926
  %v1080 = vadd.f32 %v1079, %v931
  %v1081 = vadd.f32 %v1080, %v936
  %v1082 = vadd.f32 %v1081, %v941
  %v1083 = vadd.f32 %v1082, %v946
  %v1084 = vadd.f32 %v1083, %v951
  %v1085 = vadd.f32 %v1084, %v956
  %v1086 = vadd.f32 %v1085, %v961
  %v1087 = vadd.f32 %v1086, %v966
  %v1088 = vadd.f32 %v1087, %v971
  %v1089 = vadd.f32 %v1088, %v976
  %v1090 = vadd.f32 %v1089, %v981
  %v1091 = vadd.f32 %v1090, %v986
  %v1092 = vadd.f32 %v1091, %v991
  %v1093 = vadd.f32 %v1092, %v996
  %v1094 = vadd.f32 %v1093, %v1001
  %v1095 = vadd.f32 %v1094, %v1006
  %v1096 = vadd.f32 %v1095, %v1011
  %v1097 = vadd.f32 %v1096, %v1016
  %v1098 = vadd.f32 %v1097, %v1021
  %v1099 = vadd.f32 %v1098, %v1026
  %v1100 = vadd.f32 %v1099, %v1031
  %v1101 = vadd.f32 %v1100, %v1036
  %v1102 = vadd.f32 %v1101, %v1041
  %v1103 = vadd.f32 %v1102, %v1046
  %v1104 = vadd.f32 %v1103, %v1051
  %v1105 = vadd.f32 %v1104, %v1056
  %v1106 = vadd.f32 %v1105, %v1061
  %v1107 = vadd.f32 %v1106, %v1066
  %v1108 = vadd.f32 %v1107, %v1071
  %v1109 = vadd.f32 %v1108, %v1076
  %v1110 = vrot.slane %v1109, 4
  %v1111 = vadd.f32 %v1109, %v1110
  %v1112 = vrot.slane %v1111, 2
  %v1113 = vadd.f32 %v1111, %v1112
  %v1114 = vrot.slane %v1113, 1
  %v1115 = vadd.f32 %v1113, %v1114
  %v1116 = vmul.f32 %v1115, %v473
  %v1117 = vmul.f32 %v921, %v921
  %v1118 = vmul.f32 %v926, %v926
  %v1119 = vmul.f32 %v931, %v931
  %v1120 = vmul.f32 %v936, %v936
  %v1121 = vmul.f32 %v941, %v941
  %v1122 = vmul.f32 %v946, %v946
  %v1123 = vmul.f32 %v951, %v951
  %v1124 = vmul.f32 %v956, %v956
  %v1125 = vmul.f32 %v961, %v961
  %v1126 = vmul.f32 %v966, %v966
  %v1127 = vmul.f32 %v971, %v971
  %v1128 = vmul.f32 %v976, %v976
  %v1129 = vmul.f32 %v981, %v981
  %v1130 = vmul.f32 %v986, %v986
  %v1131 = vmul.f32 %v991, %v991
  %v1132 = vmul.f32 %v996, %v996
  %v1133 = vmul.f32 %v1001, %v1001
  %v1134 = vmul.f32 %v1006, %v1006
  %v1135 = vmul.f32 %v1011, %v1011
  %v1136 = vmul.f32 %v1016, %v1016
  %v1137 = vmul.f32 %v1021, %v1021
  %v1138 = vmul.f32 %v1026, %v1026
  %v1139 = vmul.f32 %v1031, %v1031
  %v1140 = vmul.f32 %v1036, %v1036
  %v1141 = vmul.f32 %v1041, %v1041
  %v1142 = vmul.f32 %v1046, %v1046
  %v1143 = vmul.f32 %v1051, %v1051
  %v1144 = vmul.f32 %v1056, %v1056
  %v1145 = vmul.f32 %v1061, %v1061
  %v1146 = vmul.f32 %v1066, %v1066
  %v1147 = vmul.f32 %v1071, %v1071
  %v1148 = vmul.f32 %v1076, %v1076
  %v1149 = vadd.f32 %v1117, %v1118
  %v1150 = vadd.f32 %v1149, %v1119
  %v1151 = vadd.f32 %v1150, %v1120
  %v1152 = vadd.f32 %v1151, %v1121
  %v1153 = vadd.f32 %v1152, %v1122
  %v1154 = vadd.f32 %v1153, %v1123
  %v1155 = vadd.f32 %v1154, %v1124
  %v1156 = vadd.f32 %v1155, %v1125
  %v1157 = vadd.f32 %v1156, %v1126
  %v1158 = vadd.f32 %v1157, %v1127
  %v1159 = vadd.f32 %v1158, %v1128
  %v1160 = vadd.f32 %v1159, %v1129
  %v1161 = vadd.f32 %v1160, %v1130
  %v1162 = vadd.f32 %v1161, %v1131
  %v1163 = vadd.f32 %v1162, %v1132
  %v1164 = vadd.f32 %v1163, %v1133
  %v1165 = vadd.f32 %v1164, %v1134
  %v1166 = vadd.f32 %v1165, %v1135
  %v1167 = vadd.f32 %v1166, %v1136
  %v1168 = vadd.f32 %v1167, %v1137
  %v1169 = vadd.f32 %v1168, %v1138
  %v1170 = vadd.f32 %v1169, %v1139
  %v1171 = vadd.f32 %v1170, %v1140
  %v1172 = vadd.f32 %v1171, %v1141
  %v1173 = vadd.f32 %v1172, %v1142
  %v1174 = vadd.f32 %v1173, %v1143
  %v1175 = vadd.f32 %v1174, %v1144
  %v1176 = vadd.f32 %v1175, %v1145
  %v1177 = vadd.f32 %v1176, %v1146
  %v1178 = vadd.f32 %v1177, %v1147
  %v1179 = vadd.f32 %v1178, %v1148
  %v1180 = vrot.slane %v1179, 4
  %v1181 = vadd.f32 %v1179, %v1180
  %v1182 = vrot.slane %v1181, 2
  %v1183 = vadd.f32 %v1181, %v1182
  %v1184 = vrot.slane %v1183, 1
  %v1185 = vadd.f32 %v1183, %v1184
  %v1186 = vmul.f32 %v1185, %v473
  %v1187 = vmul.f32 %v1116, %v1116
  %v1188 = vsub.f32 %v1186, %v1187
  %v1189 = vmax.f32 %v1188, 0.0
  %v1190 = vadd.f32 %v1189, 1e-05
  %v1191 = vrsqrt.pop %v1190
  %v1192 = vsub.f32 0.0, %v1116
  %v1193 = vmul.f32 %v1192, %v1191
  %v1194 = vmul.f32 %v921, %v1191
  %v1195 = vmul.f32 %v926, %v1191
  %v1196 = vmul.f32 %v931, %v1191
  %v1197 = vmul.f32 %v936, %v1191
  %v1198 = vmul.f32 %v941, %v1191
  %v1199 = vmul.f32 %v946, %v1191
  %v1200 = vmul.f32 %v951, %v1191
  %v1201 = vmul.f32 %v956, %v1191
  %v1202 = vmul.f32 %v961, %v1191
  %v1203 = vmul.f32 %v966, %v1191
  %v1204 = vmul.f32 %v971, %v1191
  %v1205 = vmul.f32 %v976, %v1191
  %v1206 = vmul.f32 %v981, %v1191
  %v1207 = vmul.f32 %v986, %v1191
  %v1208 = vmul.f32 %v991, %v1191
  %v1209 = vmul.f32 %v996, %v1191
  %v1210 = vmul.f32 %v1001, %v1191
  %v1211 = vmul.f32 %v1006, %v1191
  %v1212 = vmul.f32 %v1011, %v1191
  %v1213 = vmul.f32 %v1016, %v1191
  %v1214 = vmul.f32 %v1021, %v1191
  %v1215 = vmul.f32 %v1026, %v1191
  %v1216 = vmul.f32 %v1031, %v1191
  %v1217 = vmul.f32 %v1036, %v1191
  %v1218 = vmul.f32 %v1041, %v1191
  %v1219 = vmul.f32 %v1046, %v1191
  %v1220 = vmul.f32 %v1051, %v1191
  %v1221 = vmul.f32 %v1056, %v1191
  %v1222 = vmul.f32 %v1061, %v1191
  %v1223 = vmul.f32 %v1066, %v1191
  %v1224 = vmul.f32 %v1071, %v1191
  %v1225 = vmul.f32 %v1076, %v1191
  %v1226 = vadd.f32 %v1194, %v1193
  %v1227 = vadd.f32 %v1195, %v1193
  %v1228 = vadd.f32 %v1196, %v1193
  %v1229 = vadd.f32 %v1197, %v1193
  %v1230 = vadd.f32 %v1198, %v1193
  %v1231 = vadd.f32 %v1199, %v1193
  %v1232 = vadd.f32 %v1200, %v1193
  %v1233 = vadd.f32 %v1201, %v1193
  %v1234 = vadd.f32 %v1202, %v1193
  %v1235 = vadd.f32 %v1203, %v1193
  %v1236 = vadd.f32 %v1204, %v1193
  %v1237 = vadd.f32 %v1205, %v1193
  %v1238 = vadd.f32 %v1206, %v1193
  %v1239 = vadd.f32 %v1207, %v1193
  %v1240 = vadd.f32 %v1208, %v1193
  %v1241 = vadd.f32 %v1209, %v1193
  %v1242 = vadd.f32 %v1210, %v1193
  %v1243 = vadd.f32 %v1211, %v1193
  %v1244 = vadd.f32 %v1212, %v1193
  %v1245 = vadd.f32 %v1213, %v1193
  %v1246 = vadd.f32 %v1214, %v1193
  %v1247 = vadd.f32 %v1215, %v1193
  %v1248 = vadd.f32 %v1216, %v1193
  %v1249 = vadd.f32 %v1217, %v1193
  %v1250 = vadd.f32 %v1218, %v1193
  %v1251 = vadd.f32 %v1219, %v1193
  %v1252 = vadd.f32 %v1220, %v1193
  %v1253 = vadd.f32 %v1221, %v1193
  %v1254 = vadd.f32 %v1222, %v1193
  %v1255 = vadd.f32 %v1223, %v1193
  %v1256 = vadd.f32 %v1224, %v1193
  %v1257 = vadd.f32 %v1225, %v1193
  %v1258 = vmax.f32 %v1226, 0.0
  %v1259 = vmax.f32 %v1227, 0.0
  %v1260 = vmax.f32 %v1228, 0.0
  %v1261 = vmax.f32 %v1229, 0.0
  %v1262 = vmax.f32 %v1230, 0.0
  %v1263 = vmax.f32 %v1231, 0.0
  %v1264 = vmax.f32 %v1232, 0.0
  %v1265 = vmax.f32 %v1233, 0.0
  %v1266 = vmax.f32 %v1234, 0.0
  %v1267 = vmax.f32 %v1235, 0.0
  %v1268 = vmax.f32 %v1236, 0.0
  %v1269 = vmax.f32 %v1237, 0.0
  %v1270 = vmax.f32 %v1238, 0.0
  %v1271 = vmax.f32 %v1239, 0.0
  %v1272 = vmax.f32 %v1240, 0.0
  %v1273 = vmax.f32 %v1241, 0.0
  %v1274 = vmax.f32 %v1242, 0.0
  %v1275 = vmax.f32 %v1243, 0.0
  %v1276 = vmax.f32 %v1244, 0.0
  %v1277 = vmax.f32 %v1245, 0.0
  %v1278 = vmax.f32 %v1246, 0.0
  %v1279 = vmax.f32 %v1247, 0.0
  %v1280 = vmax.f32 %v1248, 0.0
  %v1281 = vmax.f32 %v1249, 0.0
  %v1282 = vmax.f32 %v1250, 0.0
  %v1283 = vmax.f32 %v1251, 0.0
  %v1284 = vmax.f32 %v1252, 0.0
  %v1285 = vmax.f32 %v1253, 0.0
  %v1286 = vmax.f32 %v1254, 0.0
  %v1287 = vmax.f32 %v1255, 0.0
  %v1288 = vmax.f32 %v1256, 0.0
  %v1289 = vmax.f32 %v1257, 0.0
  %v1290 = vld [vmem:[%s3] sm:$0xff]
  %v1291 = vld [vmem:[%s3 + $0x8] sm:$0xff]
  %v1292 = vld [vmem:[%s3 + $0x10] sm:$0xff]
  %v1293 = vld [vmem:[%s3 + $0x18] sm:$0xff]
  %v1294 = vld [vmem:[%s3 + $0x20] sm:$0xff]
  %v1295 = vld [vmem:[%s3 + $0x28] sm:$0xff]
  %v1296 = vld [vmem:[%s3 + $0x30] sm:$0xff]
  %v1297 = vld [vmem:[%s3 + $0x38] sm:$0xff]
  %v1298 = vld [vmem:[%s3 + $0x40] sm:$0xff]
  %v1299 = vld [vmem:[%s3 + $0x48] sm:$0xff]
  %v1300 = vld [vmem:[%s3 + $0x50] sm:$0xff]
  %v1301 = vld [vmem:[%s3 + $0x58] sm:$0xff]
  %v1302 = vld [vmem:[%s3 + $0x60] sm:$0xff]
  %v1303 = vld [vmem:[%s3 + $0x68] sm:$0xff]
  %v1304 = vld [vmem:[%s3 + $0x70] sm:$0xff]
  %v1305 = vld [vmem:[%s3 + $0x78] sm:$0xff]
  %v1306 = vld [vmem:[%s4] sm:$0x1]
  %v1308 = vlaneseq
  %v1309 = vshrl.u32 %v1308, 7
  %v1310 = vsub.s32 0, %v1309
  %v1311 = vrot.slane %v1306, %v1310
  %1313 = vmatprep.subr.mxu0 0.0
  %1314 = vmatpush1.msra.mxu0 %v1290
  %1315 = vmatprep.subr.mxu0 0.0
  %1316 = vmatpush1.msra.mxu0 %v1291
  %1317 = vmatprep.subr.mxu0 0.0
  %1318 = vmatpush1.msra.mxu0 %v1292
  %1319 = vmatprep.subr.mxu0 0.0
  %1320 = vmatpush1.msra.mxu0 %v1293
  %1321 = vmatprep.subr.mxu0 0.0
  %1322 = vmatpush1.msra.mxu0 %v1294
  %1323 = vmatprep.subr.mxu0 0.0
  %1324 = vmatpush1.msra.mxu0 %v1295
  %1325 = vmatprep.subr.mxu0 0.0
  %1326 = vmatpush1.msra.mxu0 %v1296
  %1327 = vmatprep.subr.mxu0 0.0
  %1328 = vmatpush1.msra.mxu0 %v1297
  %1329 = vmatprep.subr.mxu0 0.0
  %1330 = vmatpush1.msra.mxu0 %v1298
  %1331 = vmatprep.subr.mxu0 0.0
  %1332 = vmatpush1.msra.mxu0 %v1299
  %1333 = vmatprep.subr.mxu0 0.0
  %1334 = vmatpush1.msra.mxu0 %v1300
  %1335 = vmatprep.subr.mxu0 0.0
  %1336 = vmatpush1.msra.mxu0 %v1301
  %1337 = vmatprep.subr.mxu0 0.0
  %1338 = vmatpush1.msra.mxu0 %v1302
  %1339 = vmatprep.subr.mxu0 0.0
  %1340 = vmatpush1.msra.mxu0 %v1303
  %1341 = vmatprep.subr.mxu0 0.0
  %1342 = vmatpush1.msra.mxu0 %v1304
  %1343 = vmatprep.subr.mxu0 0.0
  %1344 = vmatpush1.msra.mxu0 %v1305
  %1345 = vmatprep.subr.mxu0 0.0
  %1346 = vmatpush1.msra.mxu0 0.0
  %1347 = vmatprep.subr.mxu0 0.0
  %1348 = vmatpush1.msra.mxu0 0.0
  %1349 = vmatprep.subr.mxu0 0.0
  %1350 = vmatpush1.msra.mxu0 0.0
  %1351 = vmatprep.subr.mxu0 0.0
  %1352 = vmatpush1.msra.mxu0 0.0
  %1353 = vmatprep.subr.mxu0 0.0
  %1354 = vmatpush1.msra.mxu0 0.0
  %1355 = vmatprep.subr.mxu0 0.0
  %1356 = vmatpush1.msra.mxu0 0.0
  %1357 = vmatprep.subr.mxu0 0.0
  %1358 = vmatpush1.msra.mxu0 0.0
  %1359 = vmatprep.subr.mxu0 0.0
  %1360 = vmatpush1.msra.mxu0 0.0
  %1361 = vmatprep.subr.mxu0 0.0
  %1362 = vmatpush1.msra.mxu0 0.0
  %1363 = vmatprep.subr.mxu0 0.0
  %1364 = vmatpush1.msra.mxu0 0.0
  %1365 = vmatprep.subr.mxu0 0.0
  %1366 = vmatpush1.msra.mxu0 0.0
  %1367 = vmatprep.subr.mxu0 0.0
  %1368 = vmatpush1.msra.mxu0 0.0
  %1369 = vmatprep.subr.mxu0 0.0
  %1370 = vmatpush1.msra.mxu0 0.0
  %1371 = vmatprep.subr.mxu0 0.0
  %1372 = vmatpush1.msra.mxu0 0.0
  %1373 = vmatprep.subr.mxu0 0.0
  %1374 = vmatpush1.msra.mxu0 0.0
  %1375 = vmatprep.subr.mxu0 0.0
  %1376 = vmatpush1.msra.mxu0 0.0
  %1377 = vmatprep.mubr.f32.mxu0 0.0
  %1378 = vmatmul.mubr.f32.gmra.mrb[0].mxu0 %v1258
  %v1379 = vpop.f32.mrb[0].mxu0
  %v1380 = vadd.f32 %v1311, %v1379
  %v1381 = vpop.f32.mrb[0].mxu0
  %1382 = vmatprep.mubr.f32.mxu0 0.0
  %1383 = vmatmul.mubr.f32.gmra.mrb[0].mxu0 %v1259
  %v1384 = vpop.f32.mrb[0].mxu0
  %v1385 = vadd.f32 %v1311, %v1384
  %v1386 = vpop.f32.mrb[0].mxu0
  %1387 = vmatprep.mubr.f32.mxu0 0.0
  %1388 = vmatmul.mubr.f32.gmra.mrb[0].mxu0 %v1260
  %v1389 = vpop.f32.mrb[0].mxu0
  %v1390 = vadd.f32 %v1311, %v1389
  %v1391 = vpop.f32.mrb[0].mxu0
  %1392 = vmatprep.mubr.f32.mxu0 0.0
  %1393 = vmatmul.mubr.f32.gmra.mrb[0].mxu0 %v1261
  %v1394 = vpop.f32.mrb[0].mxu0
  %v1395 = vadd.f32 %v1311, %v1394
  %v1396 = vpop.f32.mrb[0].mxu0
  %1397 = vmatprep.mubr.f32.mxu0 0.0
  %1398 = vmatmul.mubr.f32.gmra.mrb[0].mxu0 %v1262
  %v1399 = vpop.f32.mrb[0].mxu0
  %v1400 = vadd.f32 %v1311, %v1399
  %v1401 = vpop.f32.mrb[0].mxu0
  %1402 = vmatprep.mubr.f32.mxu0 0.0
  %1403 = vmatmul.mubr.f32.gmra.mrb[0].mxu0 %v1263
  %v1404 = vpop.f32.mrb[0].mxu0
  %v1405 = vadd.f32 %v1311, %v1404
  %v1406 = vpop.f32.mrb[0].mxu0
  %1407 = vmatprep.mubr.f32.mxu0 0.0
  %1408 = vmatmul.mubr.f32.gmra.mrb[0].mxu0 %v1264
  %v1409 = vpop.f32.mrb[0].mxu0
  %v1410 = vadd.f32 %v1311, %v1409
  %v1411 = vpop.f32.mrb[0].mxu0
  %1412 = vmatprep.mubr.f32.mxu0 0.0
  %1413 = vmatmul.mubr.f32.gmra.mrb[0].mxu0 %v1265
  %v1414 = vpop.f32.mrb[0].mxu0
  %v1415 = vadd.f32 %v1311, %v1414
  %v1416 = vpop.f32.mrb[0].mxu0
  %1417 = vmatprep.mubr.f32.mxu0 0.0
  %1418 = vmatmul.mubr.f32.gmra.mrb[0].mxu0 %v1266
  %v1419 = vpop.f32.mrb[0].mxu0
  %v1420 = vadd.f32 %v1311, %v1419
  %v1421 = vpop.f32.mrb[0].mxu0
  %1422 = vmatprep.mubr.f32.mxu0 0.0
  %1423 = vmatmul.mubr.f32.gmra.mrb[0].mxu0 %v1267
  %v1424 = vpop.f32.mrb[0].mxu0
  %v1425 = vadd.f32 %v1311, %v1424
  %v1426 = vpop.f32.mrb[0].mxu0
  %1427 = vmatprep.mubr.f32.mxu0 0.0
  %1428 = vmatmul.mubr.f32.gmra.mrb[0].mxu0 %v1268
  %v1429 = vpop.f32.mrb[0].mxu0
  %v1430 = vadd.f32 %v1311, %v1429
  %v1431 = vpop.f32.mrb[0].mxu0
  %1432 = vmatprep.mubr.f32.mxu0 0.0
  %1433 = vmatmul.mubr.f32.gmra.mrb[0].mxu0 %v1269
  %v1434 = vpop.f32.mrb[0].mxu0
  %v1435 = vadd.f32 %v1311, %v1434
  %v1436 = vpop.f32.mrb[0].mxu0
  %1437 = vmatprep.mubr.f32.mxu0 0.0
  %1438 = vmatmul.mubr.f32.gmra.mrb[0].mxu0 %v1270
  %v1439 = vpop.f32.mrb[0].mxu0
  %v1440 = vadd.f32 %v1311, %v1439
  %v1441 = vpop.f32.mrb[0].mxu0
  %1442 = vmatprep.mubr.f32.mxu0 0.0
  %1443 = vmatmul.mubr.f32.gmra.mrb[0].mxu0 %v1271
  %v1444 = vpop.f32.mrb[0].mxu0
  %v1445 = vadd.f32 %v1311, %v1444
  %v1446 = vpop.f32.mrb[0].mxu0
  %1447 = vmatprep.mubr.f32.mxu0 0.0
  %1448 = vmatmul.mubr.f32.gmra.mrb[0].mxu0 %v1272
  %v1449 = vpop.f32.mrb[0].mxu0
  %v1450 = vadd.f32 %v1311, %v1449
  %v1451 = vpop.f32.mrb[0].mxu0
  %1452 = vmatprep.mubr.f32.mxu0 0.0
  %1453 = vmatmul.mubr.f32.gmra.mrb[0].mxu0 %v1273
  %v1454 = vpop.f32.mrb[0].mxu0
  %v1455 = vadd.f32 %v1311, %v1454
  %v1456 = vpop.f32.mrb[0].mxu0
  %1457 = vmatprep.mubr.f32.mxu0 0.0
  %1458 = vmatmul.mubr.f32.gmra.mrb[0].mxu0 %v1274
  %v1459 = vpop.f32.mrb[0].mxu0
  %v1460 = vadd.f32 %v1311, %v1459
  %v1461 = vpop.f32.mrb[0].mxu0
  %1462 = vmatprep.mubr.f32.mxu0 0.0
  %1463 = vmatmul.mubr.f32.gmra.mrb[0].mxu0 %v1275
  %v1464 = vpop.f32.mrb[0].mxu0
  %v1465 = vadd.f32 %v1311, %v1464
  %v1466 = vpop.f32.mrb[0].mxu0
  %1467 = vmatprep.mubr.f32.mxu0 0.0
  %1468 = vmatmul.mubr.f32.gmra.mrb[0].mxu0 %v1276
  %v1469 = vpop.f32.mrb[0].mxu0
  %v1470 = vadd.f32 %v1311, %v1469
  %v1471 = vpop.f32.mrb[0].mxu0
  %1472 = vmatprep.mubr.f32.mxu0 0.0
  %1473 = vmatmul.mubr.f32.gmra.mrb[0].mxu0 %v1277
  %v1474 = vpop.f32.mrb[0].mxu0
  %v1475 = vadd.f32 %v1311, %v1474
  %v1476 = vpop.f32.mrb[0].mxu0
  %1477 = vmatprep.mubr.f32.mxu0 0.0
  %1478 = vmatmul.mubr.f32.gmra.mrb[0].mxu0 %v1278
  %v1479 = vpop.f32.mrb[0].mxu0
  %v1480 = vadd.f32 %v1311, %v1479
  %v1481 = vpop.f32.mrb[0].mxu0
  %1482 = vmatprep.mubr.f32.mxu0 0.0
  %1483 = vmatmul.mubr.f32.gmra.mrb[0].mxu0 %v1279
  %v1484 = vpop.f32.mrb[0].mxu0
  %v1485 = vadd.f32 %v1311, %v1484
  %v1486 = vpop.f32.mrb[0].mxu0
  %1487 = vmatprep.mubr.f32.mxu0 0.0
  %1488 = vmatmul.mubr.f32.gmra.mrb[0].mxu0 %v1280
  %v1489 = vpop.f32.mrb[0].mxu0
  %v1490 = vadd.f32 %v1311, %v1489
  %v1491 = vpop.f32.mrb[0].mxu0
  %1492 = vmatprep.mubr.f32.mxu0 0.0
  %1493 = vmatmul.mubr.f32.gmra.mrb[0].mxu0 %v1281
  %v1494 = vpop.f32.mrb[0].mxu0
  %v1495 = vadd.f32 %v1311, %v1494
  %v1496 = vpop.f32.mrb[0].mxu0
  %1497 = vmatprep.mubr.f32.mxu0 0.0
  %1498 = vmatmul.mubr.f32.gmra.mrb[0].mxu0 %v1282
  %v1499 = vpop.f32.mrb[0].mxu0
  %v1500 = vadd.f32 %v1311, %v1499
  %v1501 = vpop.f32.mrb[0].mxu0
  %1502 = vmatprep.mubr.f32.mxu0 0.0
  %1503 = vmatmul.mubr.f32.gmra.mrb[0].mxu0 %v1283
  %v1504 = vpop.f32.mrb[0].mxu0
  %v1505 = vadd.f32 %v1311, %v1504
  %v1506 = vpop.f32.mrb[0].mxu0
  %1507 = vmatprep.mubr.f32.mxu0 0.0
  %1508 = vmatmul.mubr.f32.gmra.mrb[0].mxu0 %v1284
  %v1509 = vpop.f32.mrb[0].mxu0
  %v1510 = vadd.f32 %v1311, %v1509
  %v1511 = vpop.f32.mrb[0].mxu0
  %1512 = vmatprep.mubr.f32.mxu0 0.0
  %1513 = vmatmul.mubr.f32.gmra.mrb[0].mxu0 %v1285
  %v1514 = vpop.f32.mrb[0].mxu0
  %v1515 = vadd.f32 %v1311, %v1514
  %v1516 = vpop.f32.mrb[0].mxu0
  %1517 = vmatprep.mubr.f32.mxu0 0.0
  %1518 = vmatmul.mubr.f32.gmra.mrb[0].mxu0 %v1286
  %v1519 = vpop.f32.mrb[0].mxu0
  %v1520 = vadd.f32 %v1311, %v1519
  %v1521 = vpop.f32.mrb[0].mxu0
  %1522 = vmatprep.mubr.f32.mxu0 0.0
  %1523 = vmatmul.mubr.f32.gmra.mrb[0].mxu0 %v1287
  %v1524 = vpop.f32.mrb[0].mxu0
  %v1525 = vadd.f32 %v1311, %v1524
  %v1526 = vpop.f32.mrb[0].mxu0
  %1527 = vmatprep.mubr.f32.mxu0 0.0
  %1528 = vmatmul.mubr.f32.gmra.mrb[0].mxu0 %v1288
  %v1529 = vpop.f32.mrb[0].mxu0
  %v1530 = vadd.f32 %v1311, %v1529
  %v1531 = vpop.f32.mrb[0].mxu0
  %1532 = vmatprep.mubr.f32.mxu0 0.0
  %1533 = vmatmul.mubr.f32.gmra.mrb[0].mxu0 %v1289
  %v1534 = vpop.f32.mrb[0].mxu0
  %v1535 = vadd.f32 %v1311, %v1534
  %v1536 = vpop.f32.mrb[0].mxu0
  %1537 = vdwg.mxu0
  %vm1538 = vcmask 523264
  %1539 = vst.msk [vmem:[%s5] sm:$0xff] %vm1538, %v1380
  %1540 = vst.msk [vmem:[%s5 + $0x8] sm:$0xff] %vm1538, %v1385
  %1541 = vst.msk [vmem:[%s5 + $0x10] sm:$0xff] %vm1538, %v1390
  %1542 = vst.msk [vmem:[%s5 + $0x18] sm:$0xff] %vm1538, %v1395
  %1543 = vst.msk [vmem:[%s5 + $0x20] sm:$0xff] %vm1538, %v1400
  %1544 = vst.msk [vmem:[%s5 + $0x28] sm:$0xff] %vm1538, %v1405
  %1545 = vst.msk [vmem:[%s5 + $0x30] sm:$0xff] %vm1538, %v1410
  %1546 = vst.msk [vmem:[%s5 + $0x38] sm:$0xff] %vm1538, %v1415
  %1547 = vst.msk [vmem:[%s5 + $0x40] sm:$0xff] %vm1538, %v1420
  %1548 = vst.msk [vmem:[%s5 + $0x48] sm:$0xff] %vm1538, %v1425
  %1549 = vst.msk [vmem:[%s5 + $0x50] sm:$0xff] %vm1538, %v1430
  %1550 = vst.msk [vmem:[%s5 + $0x58] sm:$0xff] %vm1538, %v1435
  %1551 = vst.msk [vmem:[%s5 + $0x60] sm:$0xff] %vm1538, %v1440
  %1552 = vst.msk [vmem:[%s5 + $0x68] sm:$0xff] %vm1538, %v1445
  %1553 = vst.msk [vmem:[%s5 + $0x70] sm:$0xff] %vm1538, %v1450
  %1554 = vst.msk [vmem:[%s5 + $0x78] sm:$0xff] %vm1538, %v1455
  %1555 = vst.msk [vmem:[%s5 + $0x80] sm:$0xff] %vm1538, %v1460
  %1556 = vst.msk [vmem:[%s5 + $0x88] sm:$0xff] %vm1538, %v1465
  %1557 = vst.msk [vmem:[%s5 + $0x90] sm:$0xff] %vm1538, %v1470
  %1558 = vst.msk [vmem:[%s5 + $0x98] sm:$0xff] %vm1538, %v1475
  %1559 = vst.msk [vmem:[%s5 + $0xa0] sm:$0xff] %vm1538, %v1480
  %1560 = vst.msk [vmem:[%s5 + $0xa8] sm:$0xff] %vm1538, %v1485
  %1561 = vst.msk [vmem:[%s5 + $0xb0] sm:$0xff] %vm1538, %v1490
  %1562 = vst.msk [vmem:[%s5 + $0xb8] sm:$0xff] %vm1538, %v1495
  %1563 = vst.msk [vmem:[%s5 + $0xc0] sm:$0xff] %vm1538, %v1500
  %1564 = vst.msk [vmem:[%s5 + $0xc8] sm:$0xff] %vm1538, %v1505
  %1565 = vst.msk [vmem:[%s5 + $0xd0] sm:$0xff] %vm1538, %v1510
  %1566 = vst.msk [vmem:[%s5 + $0xd8] sm:$0xff] %vm1538, %v1515
  %1567 = vst.msk [vmem:[%s5 + $0xe0] sm:$0xff] %vm1538, %v1520
  %1568 = vst.msk [vmem:[%s5 + $0xe8] sm:$0xff] %vm1538, %v1525
  %1569 = vst.msk [vmem:[%s5 + $0xf0] sm:$0xff] %vm1538, %v1530
  %1570 = vst.msk [vmem:[%s5 + $0xf8] sm:$0xff] %vm1538, %v1535
  // Predicated region
  $region22: #{tpu_custom_call.1} parent=0 // pred_check
    _
  $region23: #{tpu_custom_call.1} parent=0 // pred_check_branch
    %1572 = sbr.rel (0) target = $region25
  $region24: #{tpu_custom_call.1} parent=0 // pred_region
    _
  $region25: #{tpu_custom_call.1} parent=0 // pred_fallthru
    _
  // Predicated region
  $region26: #{tpu_custom_call.1} parent=0 // pred_check
    _
  $region27: #{tpu_custom_call.1} parent=0 // pred_check_branch
    %1574 = sbr.rel (0) target = $region29
  $region28: #{tpu_custom_call.1} parent=0 // pred_region
    _
  $region29: #{tpu_custom_call.1} parent=0 // pred_fallthru
    _

</llo_original>
